<compile_context>
chip_gen: v7x
topology: tpu7x:2x2x1
jax: 0.10.0
libtpu: 0.0.40
codegen_flags: <defaults>
</compile_context>

<pallas_src>
import functools

import jax
import jax.numpy as jnp
from jax.experimental import pallas as pl
from jax.experimental.pallas import tpu as pltpu


# ----------------------------------------------------------------------------
# Fused kernel: [x2d, (wih_t, whh_t, b) x num_layers, wfc, bfc] -> y2d
# ----------------------------------------------------------------------------
def _fused_lstm_fc_kernel(*refs, seq_len, batch, hidden, out_dim, num_layers):
    x_ref = refs[0]
    layer_refs = refs[1:1 + 3 * num_layers]
    wfc_ref = refs[1 + 3 * num_layers]          # (O, H)
    bfc_ref = refs[2 + 3 * num_layers]          # (1, O)
    out_ref = refs[3 + 3 * num_layers]          # (S*B, O)
    h_all_scr = refs[4 + 3 * num_layers]        # VMEM (S*B, H): per-layer output slab

    S, B, H = seq_len, batch, hidden

    # Layer input starts as the flattened input sequence (S*B, I).
    layer_in = x_ref[...].astype(jnp.float32)

    for layer in range(num_layers):
        wih = layer_refs[3 * layer][...]        # (in, 4H)  (pre-transposed)
        whh = layer_refs[3 * layer + 1][...]    # (H, 4H)   (pre-transposed)
        b = layer_refs[3 * layer + 2][...]      # (1, 4H)   (b_ih + b_hh)

        # Hoisted input projection: one big MXU matmul for the whole sequence,
        # bias folded in once (not per time step).
        zx = jnp.dot(layer_in, wih, preferred_element_type=jnp.float32) + b  # (S*B, 4H)

        h = jnp.zeros((B, H), jnp.float32)
        c = jnp.zeros((B, H), jnp.float32)

        # Serial recurrence: fully unrolled static loop (S is small & static).
        for t in range(S):
            z = zx[t * B:(t + 1) * B, :] + jnp.dot(
                h, whh, preferred_element_type=jnp.float32)        # (B, 4H)

            # Full-vreg EUP pushes, then static gate slices (order: i, f, g, o).
            sig = jax.nn.sigmoid(z)
            tnh = jnp.tanh(z)
            i_g = sig[:, 0:H]
            f_g = sig[:, H:2 * H]
            g_g = tnh[:, 2 * H:3 * H]
            o_g = sig[:, 3 * H:4 * H]

            c = f_g * c + i_g * g_g
            h = o_g * jnp.tanh(c)

            # Accumulate into the VMEM-resident output slab (never hits HBM).
            h_all_scr[t * B:(t + 1) * B, :] = h

        layer_in = h_all_scr[...]               # (S*B, H) input to next layer / FC

    # Dropout(0.5) is identity in eval/inference mode.
    h_last = layer_in                           # (S*B, H)

    if out_dim == 1:
        # FC as VPU multiply + lane (XLU) reduction — avoids a lane-width-1
        # MXU matmul with fully masked output.
        y = jnp.sum(h_last * wfc_ref[...], axis=1, keepdims=True) + bfc_ref[...]
    else:
        y = (jnp.dot(h_last, wfc_ref[...].T, preferred_element_type=jnp.float32)
             + bfc_ref[...])
    out_ref[...] = y.astype(out_ref.dtype)      # single lane writeback


# ----------------------------------------------------------------------------
# Wrapper: glue (transposes, bias fusion, flattening) + one pallas_call.
# ----------------------------------------------------------------------------
def lstm_regression_forward(x, params):
    S, B, I = x.shape
    num_layers = len(params["lstm"])
    H = params["lstm"][0]["w_hh"].shape[1]
    O = params["fc_w"].shape[0]

    x2d = x.reshape(S * B, I).astype(jnp.float32)

    flat_inputs = [x2d]
    in_specs = [pl.BlockSpec((S * B, I), lambda i: (0, 0))]
    for layer in params["lstm"]:
        wih_t = jnp.asarray(layer["w_ih"], jnp.float32).T          # (in, 4H)
        whh_t = jnp.asarray(layer["w_hh"], jnp.float32).T          # (H, 4H)
        b = (layer["b_ih"] + layer["b_hh"]).astype(jnp.float32).reshape(1, 4 * H)
        for arr in (wih_t, whh_t, b):
            flat_inputs.append(arr)
            in_specs.append(pl.BlockSpec(arr.shape, lambda i: (0, 0)))

    wfc = jnp.asarray(params["fc_w"], jnp.float32)                 # (O, H)
    bfc = jnp.asarray(params["fc_b"], jnp.float32).reshape(1, O)
    flat_inputs += [wfc, bfc]
    in_specs += [pl.BlockSpec((O, H), lambda i: (0, 0)),
                 pl.BlockSpec((1, O), lambda i: (0, 0))]

    kernel = functools.partial(_fused_lstm_fc_kernel, seq_len=S, batch=B,
                               hidden=H, out_dim=O, num_layers=num_layers)

    y2d = pl.pallas_call(
        kernel,
        out_shape=jax.ShapeDtypeStruct((S * B, O), jnp.float32),
        grid_spec=pltpu.PrefetchScalarGridSpec(
            num_scalar_prefetch=0,
            grid=(1,),
            in_specs=in_specs,
            out_specs=pl.BlockSpec((S * B, O), lambda i: (0, 0)),
            scratch_shapes=[pltpu.VMEM((S * B, H), jnp.float32)],   # h slab (reused)
        ),
        compiler_params=pltpu.CompilerParams(
            dimension_semantics=("arbitrary",)),
    )(*flat_inputs)

    return y2d.reshape(S, B, O)


# ----------------------------------------------------------------------------
# PyTorch-style parameter init (uniform(-1/sqrt(H), 1/sqrt(H))), deterministic.
# ----------------------------------------------------------------------------
def init_params(key, input_size, hidden_size, output_size, num_layers):
    k = 1.0 / jnp.sqrt(jnp.float32(hidden_size))
    params = {"lstm": []}
    for layer in range(num_layers):
        in_sz = input_size if layer == 0 else hidden_size
        key, k1, k2, k3, k4 = jax.random.split(key, 5)
        params["lstm"].append({
            "w_ih": jax.random.uniform(k1, (4 * hidden_size, in_sz),
                                       jnp.float32, -k, k),
            "w_hh": jax.random.uniform(k2, (4 * hidden_size, hidden_size),
                                       jnp.float32, -k, k),
            "b_ih": jax.random.uniform(k3, (4 * hidden_size,),
                                       jnp.float32, -k, k),
            "b_hh": jax.random.uniform(k4, (4 * hidden_size,),
                                       jnp.float32, -k, k),
        })
    key, k5, k6 = jax.random.split(key, 3)
    params["fc_w"] = jax.random.uniform(k5, (output_size, hidden_size),
                                        jnp.float32, -k, k)
    params["fc_b"] = jax.random.uniform(k6, (output_size,),
                                        jnp.float32, -k, k)
    return params


if __name__ == "__main__":
    SEQ, BATCH = 8, 2
    INPUT_SIZE, HIDDEN_SIZE, OUTPUT_SIZE, NUM_LAYERS = 16, 32, 1, 2

    key = jax.random.PRNGKey(0)
    key, kx = jax.random.split(key)
    x = jax.random.normal(kx, (SEQ, BATCH, INPUT_SIZE), jnp.float32)

    params = init_params(key, INPUT_SIZE, HIDDEN_SIZE, OUTPUT_SIZE, NUM_LAYERS)

    y = lstm_regression_forward(x, params)
    y = jax.block_until_ready(y)
    assert y.shape == (SEQ, BATCH, OUTPUT_SIZE), y.shape
    print("KERNEL_OK")
</pallas_src>

<mosaic_0001>
module attributes {stable_mosaic.version = 11 : i64} {
  func.func @_fused_lstm_fc_kernel(%arg0: i32, %arg1: memref<16x16xf32, #tpu.memory_space<vmem>>, %arg2: memref<16x128xf32, #tpu.memory_space<vmem>>, %arg3: memref<32x128xf32, #tpu.memory_space<vmem>>, %arg4: memref<1x128xf32, #tpu.memory_space<vmem>>, %arg5: memref<32x128xf32, #tpu.memory_space<vmem>>, %arg6: memref<32x128xf32, #tpu.memory_space<vmem>>, %arg7: memref<1x128xf32, #tpu.memory_space<vmem>>, %arg8: memref<1x32xf32, #tpu.memory_space<vmem>>, %arg9: memref<1x1xf32, #tpu.memory_space<vmem>>, %arg10: memref<16x1xf32, #tpu.memory_space<vmem>>, %arg11: memref<16x32xf32, #tpu.memory_space<vmem>>) attributes {dimension_semantics = [#tpu.dimension_semantics<arbitrary>], iteration_bounds = array<i64: 1>, scalar_prefetch = 0 : i64, scratch_operands = 1 : i64, tpu.core_type = #tpu.core_type<tc>, window_params = [{pipeline_mode = #tpu.pipeline_mode<synchronous>, transform_indices = @transform_0, window_bounds = array<i64: 16, 16>}, {pipeline_mode = #tpu.pipeline_mode<synchronous>, transform_indices = @transform_1, window_bounds = array<i64: 16, 128>}, {pipeline_mode = #tpu.pipeline_mode<synchronous>, transform_indices = @transform_2, window_bounds = array<i64: 32, 128>}, {pipeline_mode = #tpu.pipeline_mode<synchronous>, transform_indices = @transform_3, window_bounds = array<i64: 1, 128>}, {pipeline_mode = #tpu.pipeline_mode<synchronous>, transform_indices = @transform_4, window_bounds = array<i64: 32, 128>}, {pipeline_mode = #tpu.pipeline_mode<synchronous>, transform_indices = @transform_5, window_bounds = array<i64: 32, 128>}, {pipeline_mode = #tpu.pipeline_mode<synchronous>, transform_indices = @transform_6, window_bounds = array<i64: 1, 128>}, {pipeline_mode = #tpu.pipeline_mode<synchronous>, transform_indices = @transform_7, window_bounds = array<i64: 1, 32>}, {pipeline_mode = #tpu.pipeline_mode<synchronous>, transform_indices = @transform_8, window_bounds = array<i64: 1, 1>}, {pipeline_mode = #tpu.pipeline_mode<synchronous>, transform_indices = @transform_9, window_bounds = array<i64: 16, 1>}]} {
    %c0 = arith.constant 0 : index
    %c0_0 = arith.constant 0 : index
    %0 = vector.load %arg1[%c0, %c0_0] : memref<16x16xf32, #tpu.memory_space<vmem>>, vector<16x16xf32>
    %c0_1 = arith.constant 0 : index
    %c0_2 = arith.constant 0 : index
    %1 = vector.load %arg2[%c0_1, %c0_2] : memref<16x128xf32, #tpu.memory_space<vmem>>, vector<16x128xf32>
    %c0_3 = arith.constant 0 : index
    %c0_4 = arith.constant 0 : index
    %2 = vector.load %arg3[%c0_3, %c0_4] : memref<32x128xf32, #tpu.memory_space<vmem>>, vector<32x128xf32>
    %c0_5 = arith.constant 0 : index
    %c0_6 = arith.constant 0 : index
    %3 = vector.load %arg4[%c0_5, %c0_6] : memref<1x128xf32, #tpu.memory_space<vmem>>, vector<1x128xf32>
    %cst = arith.constant dense<0.000000e+00> : vector<16x128xf32>
    %4 = tpu.matmul %0, %1, %cst {dimension_numbers = #tpu.dot_dimension_numbers<[1], [0], [0], [1], [0, 0, 1, 1], [], []>} : vector<16x16xf32>, vector<16x128xf32>, vector<16x128xf32> -> vector<16x128xf32>
    %5 = vector.broadcast %3 : vector<1x128xf32> to vector<16x128xf32>
    %6 = arith.addf %4, %5 : vector<16x128xf32>
    %cst_7 = arith.constant 0.000000e+00 : f32
    %7 = vector.broadcast %cst_7 : f32 to vector<2x32xf32>
    %cst_8 = arith.constant 0.000000e+00 : f32
    %8 = vector.broadcast %cst_8 : f32 to vector<2x32xf32>
    %9 = vector.extract_strided_slice %6 {offsets = [0, 0], sizes = [2, 128], strides = [1, 1]} : vector<16x128xf32> to vector<2x128xf32>
    %cst_9 = arith.constant dense<0.000000e+00> : vector<2x128xf32>
    %10 = tpu.matmul %7, %2, %cst_9 {dimension_numbers = #tpu.dot_dimension_numbers<[1], [0], [0], [1], [0, 0, 1, 1], [], []>} : vector<2x32xf32>, vector<32x128xf32>, vector<2x128xf32> -> vector<2x128xf32>
    %11 = arith.addf %9, %10 : vector<2x128xf32>
    %12 = arith.negf %11 : vector<2x128xf32>
    %13 = math.exp %12 : vector<2x128xf32>
    %cst_10 = arith.constant 1.000000e+00 : f32
    %14 = vector.broadcast %cst_10 : f32 to vector<2x128xf32>
    %15 = arith.addf %14, %13 : vector<2x128xf32>
    %16 = arith.divf %14, %15 : vector<2x128xf32>
    %17 = math.tanh %11 : vector<2x128xf32>
    %18 = vector.extract_strided_slice %16 {offsets = [0, 0], sizes = [2, 32], strides = [1, 1]} : vector<2x128xf32> to vector<2x32xf32>
    %19 = vector.extract_strided_slice %16 {offsets = [0, 32], sizes = [2, 32], strides = [1, 1]} : vector<2x128xf32> to vector<2x32xf32>
    %20 = vector.extract_strided_slice %17 {offsets = [0, 64], sizes = [2, 32], strides = [1, 1]} : vector<2x128xf32> to vector<2x32xf32>
    %21 = vector.extract_strided_slice %16 {offsets = [0, 96], sizes = [2, 32], strides = [1, 1]} : vector<2x128xf32> to vector<2x32xf32>
    %22 = arith.mulf %19, %8 : vector<2x32xf32>
    %23 = arith.mulf %18, %20 : vector<2x32xf32>
    %24 = arith.addf %22, %23 : vector<2x32xf32>
    %25 = math.tanh %24 : vector<2x32xf32>
    %26 = arith.mulf %21, %25 : vector<2x32xf32>
    %c0_11 = arith.constant 0 : index
    %c0_12 = arith.constant 0 : index
    %27 = vector.load %arg11[%c0_11, %c0_12] : memref<16x32xf32, #tpu.memory_space<vmem>>, vector<2x32xf32>
    tpu.vector_store %arg11[%c0_11, %c0_12], %26 {strides = array<i32>} : memref<16x32xf32, #tpu.memory_space<vmem>>, vector<2x32xf32>,
    %28 = vector.extract_strided_slice %6 {offsets = [2, 0], sizes = [2, 128], strides = [1, 1]} : vector<16x128xf32> to vector<2x128xf32>
    %cst_13 = arith.constant dense<0.000000e+00> : vector<2x128xf32>
    %29 = tpu.matmul %26, %2, %cst_13 {dimension_numbers = #tpu.dot_dimension_numbers<[1], [0], [0], [1], [0, 0, 1, 1], [], []>} : vector<2x32xf32>, vector<32x128xf32>, vector<2x128xf32> -> vector<2x128xf32>
    %30 = arith.addf %28, %29 : vector<2x128xf32>
    %31 = arith.negf %30 : vector<2x128xf32>
    %32 = math.exp %31 : vector<2x128xf32>
    %cst_14 = arith.constant 1.000000e+00 : f32
    %33 = vector.broadcast %cst_14 : f32 to vector<2x128xf32>
    %34 = arith.addf %33, %32 : vector<2x128xf32>
    %35 = arith.divf %33, %34 : vector<2x128xf32>
    %36 = math.tanh %30 : vector<2x128xf32>
    %37 = vector.extract_strided_slice %35 {offsets = [0, 0], sizes = [2, 32], strides = [1, 1]} : vector<2x128xf32> to vector<2x32xf32>
    %38 = vector.extract_strided_slice %35 {offsets = [0, 32], sizes = [2, 32], strides = [1, 1]} : vector<2x128xf32> to vector<2x32xf32>
    %39 = vector.extract_strided_slice %36 {offsets = [0, 64], sizes = [2, 32], strides = [1, 1]} : vector<2x128xf32> to vector<2x32xf32>
    %40 = vector.extract_strided_slice %35 {offsets = [0, 96], sizes = [2, 32], strides = [1, 1]} : vector<2x128xf32> to vector<2x32xf32>
    %41 = arith.mulf %38, %24 : vector<2x32xf32>
    %42 = arith.mulf %37, %39 : vector<2x32xf32>
    %43 = arith.addf %41, %42 : vector<2x32xf32>
    %44 = math.tanh %43 : vector<2x32xf32>
    %45 = arith.mulf %40, %44 : vector<2x32xf32>
    %c2 = arith.constant 2 : index
    %c0_15 = arith.constant 0 : index
    %46 = vector.load %arg11[%c2, %c0_15] : memref<16x32xf32, #tpu.memory_space<vmem>>, vector<2x32xf32>
    tpu.vector_store %arg11[%c2, %c0_15], %45 {strides = array<i32>} : memref<16x32xf32, #tpu.memory_space<vmem>>, vector<2x32xf32>,
    %47 = vector.extract_strided_slice %6 {offsets = [4, 0], sizes = [2, 128], strides = [1, 1]} : vector<16x128xf32> to vector<2x128xf32>
    %cst_16 = arith.constant dense<0.000000e+00> : vector<2x128xf32>
    %48 = tpu.matmul %45, %2, %cst_16 {dimension_numbers = #tpu.dot_dimension_numbers<[1], [0], [0], [1], [0, 0, 1, 1], [], []>} : vector<2x32xf32>, vector<32x128xf32>, vector<2x128xf32> -> vector<2x128xf32>
    %49 = arith.addf %47, %48 : vector<2x128xf32>
    %50 = arith.negf %49 : vector<2x128xf32>
    %51 = math.exp %50 : vector<2x128xf32>
    %cst_17 = arith.constant 1.000000e+00 : f32
    %52 = vector.broadcast %cst_17 : f32 to vector<2x128xf32>
    %53 = arith.addf %52, %51 : vector<2x128xf32>
    %54 = arith.divf %52, %53 : vector<2x128xf32>
    %55 = math.tanh %49 : vector<2x128xf32>
    %56 = vector.extract_strided_slice %54 {offsets = [0, 0], sizes = [2, 32], strides = [1, 1]} : vector<2x128xf32> to vector<2x32xf32>
    %57 = vector.extract_strided_slice %54 {offsets = [0, 32], sizes = [2, 32], strides = [1, 1]} : vector<2x128xf32> to vector<2x32xf32>
    %58 = vector.extract_strided_slice %55 {offsets = [0, 64], sizes = [2, 32], strides = [1, 1]} : vector<2x128xf32> to vector<2x32xf32>
    %59 = vector.extract_strided_slice %54 {offsets = [0, 96], sizes = [2, 32], strides = [1, 1]} : vector<2x128xf32> to vector<2x32xf32>
    %60 = arith.mulf %57, %43 : vector<2x32xf32>
    %61 = arith.mulf %56, %58 : vector<2x32xf32>
    %62 = arith.addf %60, %61 : vector<2x32xf32>
    %63 = math.tanh %62 : vector<2x32xf32>
    %64 = arith.mulf %59, %63 : vector<2x32xf32>
    %c4 = arith.constant 4 : index
    %c0_18 = arith.constant 0 : index
    %65 = vector.load %arg11[%c4, %c0_18] : memref<16x32xf32, #tpu.memory_space<vmem>>, vector<2x32xf32>
    tpu.vector_store %arg11[%c4, %c0_18], %64 {strides = array<i32>} : memref<16x32xf32, #tpu.memory_space<vmem>>, vector<2x32xf32>,
    %66 = vector.extract_strided_slice %6 {offsets = [6, 0], sizes = [2, 128], strides = [1, 1]} : vector<16x128xf32> to vector<2x128xf32>
    %cst_19 = arith.constant dense<0.000000e+00> : vector<2x128xf32>
    %67 = tpu.matmul %64, %2, %cst_19 {dimension_numbers = #tpu.dot_dimension_numbers<[1], [0], [0], [1], [0, 0, 1, 1], [], []>} : vector<2x32xf32>, vector<32x128xf32>, vector<2x128xf32> -> vector<2x128xf32>
    %68 = arith.addf %66, %67 : vector<2x128xf32>
    %69 = arith.negf %68 : vector<2x128xf32>
    %70 = math.exp %69 : vector<2x128xf32>
    %cst_20 = arith.constant 1.000000e+00 : f32
    %71 = vector.broadcast %cst_20 : f32 to vector<2x128xf32>
    %72 = arith.addf %71, %70 : vector<2x128xf32>
    %73 = arith.divf %71, %72 : vector<2x128xf32>
    %74 = math.tanh %68 : vector<2x128xf32>
    %75 = vector.extract_strided_slice %73 {offsets = [0, 0], sizes = [2, 32], strides = [1, 1]} : vector<2x128xf32> to vector<2x32xf32>
    %76 = vector.extract_strided_slice %73 {offsets = [0, 32], sizes = [2, 32], strides = [1, 1]} : vector<2x128xf32> to vector<2x32xf32>
    %77 = vector.extract_strided_slice %74 {offsets = [0, 64], sizes = [2, 32], strides = [1, 1]} : vector<2x128xf32> to vector<2x32xf32>
    %78 = vector.extract_strided_slice %73 {offsets = [0, 96], sizes = [2, 32], strides = [1, 1]} : vector<2x128xf32> to vector<2x32xf32>
    %79 = arith.mulf %76, %62 : vector<2x32xf32>
    %80 = arith.mulf %75, %77 : vector<2x32xf32>
    %81 = arith.addf %79, %80 : vector<2x32xf32>
    %82 = math.tanh %81 : vector<2x32xf32>
    %83 = arith.mulf %78, %82 : vector<2x32xf32>
    %c6 = arith.constant 6 : index
    %c0_21 = arith.constant 0 : index
    %84 = vector.load %arg11[%c6, %c0_21] : memref<16x32xf32, #tpu.memory_space<vmem>>, vector<2x32xf32>
    tpu.vector_store %arg11[%c6, %c0_21], %83 {strides = array<i32>} : memref<16x32xf32, #tpu.memory_space<vmem>>, vector<2x32xf32>,
    %85 = vector.extract_strided_slice %6 {offsets = [8, 0], sizes = [2, 128], strides = [1, 1]} : vector<16x128xf32> to vector<2x128xf32>
    %cst_22 = arith.constant dense<0.000000e+00> : vector<2x128xf32>
    %86 = tpu.matmul %83, %2, %cst_22 {dimension_numbers = #tpu.dot_dimension_numbers<[1], [0], [0], [1], [0, 0, 1, 1], [], []>} : vector<2x32xf32>, vector<32x128xf32>, vector<2x128xf32> -> vector<2x128xf32>
    %87 = arith.addf %85, %86 : vector<2x128xf32>
    %88 = arith.negf %87 : vector<2x128xf32>
    %89 = math.exp %88 : vector<2x128xf32>
    %cst_23 = arith.constant 1.000000e+00 : f32
    %90 = vector.broadcast %cst_23 : f32 to vector<2x128xf32>
    %91 = arith.addf %90, %89 : vector<2x128xf32>
    %92 = arith.divf %90, %91 : vector<2x128xf32>
    %93 = math.tanh %87 : vector<2x128xf32>
    %94 = vector.extract_strided_slice %92 {offsets = [0, 0], sizes = [2, 32], strides = [1, 1]} : vector<2x128xf32> to vector<2x32xf32>
    %95 = vector.extract_strided_slice %92 {offsets = [0, 32], sizes = [2, 32], strides = [1, 1]} : vector<2x128xf32> to vector<2x32xf32>
    %96 = vector.extract_strided_slice %93 {offsets = [0, 64], sizes = [2, 32], strides = [1, 1]} : vector<2x128xf32> to vector<2x32xf32>
    %97 = vector.extract_strided_slice %92 {offsets = [0, 96], sizes = [2, 32], strides = [1, 1]} : vector<2x128xf32> to vector<2x32xf32>
    %98 = arith.mulf %95, %81 : vector<2x32xf32>
    %99 = arith.mulf %94, %96 : vector<2x32xf32>
    %100 = arith.addf %98, %99 : vector<2x32xf32>
    %101 = math.tanh %100 : vector<2x32xf32>
    %102 = arith.mulf %97, %101 : vector<2x32xf32>
    %c8 = arith.constant 8 : index
    %c0_24 = arith.constant 0 : index
    %103 = vector.load %arg11[%c8, %c0_24] : memref<16x32xf32, #tpu.memory_space<vmem>>, vector<2x32xf32>
    tpu.vector_store %arg11[%c8, %c0_24], %102 {strides = array<i32>} : memref<16x32xf32, #tpu.memory_space<vmem>>, vector<2x32xf32>,
    %104 = vector.extract_strided_slice %6 {offsets = [10, 0], sizes = [2, 128], strides = [1, 1]} : vector<16x128xf32> to vector<2x128xf32>
    %cst_25 = arith.constant dense<0.000000e+00> : vector<2x128xf32>
    %105 = tpu.matmul %102, %2, %cst_25 {dimension_numbers = #tpu.dot_dimension_numbers<[1], [0], [0], [1], [0, 0, 1, 1], [], []>} : vector<2x32xf32>, vector<32x128xf32>, vector<2x128xf32> -> vector<2x128xf32>
    %106 = arith.addf %104, %105 : vector<2x128xf32>
    %107 = arith.negf %106 : vector<2x128xf32>
    %108 = math.exp %107 : vector<2x128xf32>
    %cst_26 = arith.constant 1.000000e+00 : f32
    %109 = vector.broadcast %cst_26 : f32 to vector<2x128xf32>
    %110 = arith.addf %109, %108 : vector<2x128xf32>
    %111 = arith.divf %109, %110 : vector<2x128xf32>
    %112 = math.tanh %106 : vector<2x128xf32>
    %113 = vector.extract_strided_slice %111 {offsets = [0, 0], sizes = [2, 32], strides = [1, 1]} : vector<2x128xf32> to vector<2x32xf32>
    %114 = vector.extract_strided_slice %111 {offsets = [0, 32], sizes = [2, 32], strides = [1, 1]} : vector<2x128xf32> to vector<2x32xf32>
    %115 = vector.extract_strided_slice %112 {offsets = [0, 64], sizes = [2, 32], strides = [1, 1]} : vector<2x128xf32> to vector<2x32xf32>
    %116 = vector.extract_strided_slice %111 {offsets = [0, 96], sizes = [2, 32], strides = [1, 1]} : vector<2x128xf32> to vector<2x32xf32>
    %117 = arith.mulf %114, %100 : vector<2x32xf32>
    %118 = arith.mulf %113, %115 : vector<2x32xf32>
    %119 = arith.addf %117, %118 : vector<2x32xf32>
    %120 = math.tanh %119 : vector<2x32xf32>
    %121 = arith.mulf %116, %120 : vector<2x32xf32>
    %c10 = arith.constant 10 : index
    %c0_27 = arith.constant 0 : index
    %122 = vector.load %arg11[%c10, %c0_27] : memref<16x32xf32, #tpu.memory_space<vmem>>, vector<2x32xf32>
    tpu.vector_store %arg11[%c10, %c0_27], %121 {strides = array<i32>} : memref<16x32xf32, #tpu.memory_space<vmem>>, vector<2x32xf32>,
    %123 = vector.extract_strided_slice %6 {offsets = [12, 0], sizes = [2, 128], strides = [1, 1]} : vector<16x128xf32> to vector<2x128xf32>
    %cst_28 = arith.constant dense<0.000000e+00> : vector<2x128xf32>
    %124 = tpu.matmul %121, %2, %cst_28 {dimension_numbers = #tpu.dot_dimension_numbers<[1], [0], [0], [1], [0, 0, 1, 1], [], []>} : vector<2x32xf32>, vector<32x128xf32>, vector<2x128xf32> -> vector<2x128xf32>
    %125 = arith.addf %123, %124 : vector<2x128xf32>
    %126 = arith.negf %125 : vector<2x128xf32>
    %127 = math.exp %126 : vector<2x128xf32>
    %cst_29 = arith.constant 1.000000e+00 : f32
    %128 = vector.broadcast %cst_29 : f32 to vector<2x128xf32>
    %129 = arith.addf %128, %127 : vector<2x128xf32>
    %130 = arith.divf %128, %129 : vector<2x128xf32>
    %131 = math.tanh %125 : vector<2x128xf32>
    %132 = vector.extract_strided_slice %130 {offsets = [0, 0], sizes = [2, 32], strides = [1, 1]} : vector<2x128xf32> to vector<2x32xf32>
    %133 = vector.extract_strided_slice %130 {offsets = [0, 32], sizes = [2, 32], strides = [1, 1]} : vector<2x128xf32> to vector<2x32xf32>
    %134 = vector.extract_strided_slice %131 {offsets = [0, 64], sizes = [2, 32], strides = [1, 1]} : vector<2x128xf32> to vector<2x32xf32>
    %135 = vector.extract_strided_slice %130 {offsets = [0, 96], sizes = [2, 32], strides = [1, 1]} : vector<2x128xf32> to vector<2x32xf32>
    %136 = arith.mulf %133, %119 : vector<2x32xf32>
    %137 = arith.mulf %132, %134 : vector<2x32xf32>
    %138 = arith.addf %136, %137 : vector<2x32xf32>
    %139 = math.tanh %138 : vector<2x32xf32>
    %140 = arith.mulf %135, %139 : vector<2x32xf32>
    %c12 = arith.constant 12 : index
    %c0_30 = arith.constant 0 : index
    %141 = vector.load %arg11[%c12, %c0_30] : memref<16x32xf32, #tpu.memory_space<vmem>>, vector<2x32xf32>
    tpu.vector_store %arg11[%c12, %c0_30], %140 {strides = array<i32>} : memref<16x32xf32, #tpu.memory_space<vmem>>, vector<2x32xf32>,
    %142 = vector.extract_strided_slice %6 {offsets = [14, 0], sizes = [2, 128], strides = [1, 1]} : vector<16x128xf32> to vector<2x128xf32>
    %cst_31 = arith.constant dense<0.000000e+00> : vector<2x128xf32>
    %143 = tpu.matmul %140, %2, %cst_31 {dimension_numbers = #tpu.dot_dimension_numbers<[1], [0], [0], [1], [0, 0, 1, 1], [], []>} : vector<2x32xf32>, vector<32x128xf32>, vector<2x128xf32> -> vector<2x128xf32>
    %144 = arith.addf %142, %143 : vector<2x128xf32>
    %145 = arith.negf %144 : vector<2x128xf32>
    %146 = math.exp %145 : vector<2x128xf32>
    %cst_32 = arith.constant 1.000000e+00 : f32
    %147 = vector.broadcast %cst_32 : f32 to vector<2x128xf32>
    %148 = arith.addf %147, %146 : vector<2x128xf32>
    %149 = arith.divf %147, %148 : vector<2x128xf32>
    %150 = math.tanh %144 : vector<2x128xf32>
    %151 = vector.extract_strided_slice %149 {offsets = [0, 0], sizes = [2, 32], strides = [1, 1]} : vector<2x128xf32> to vector<2x32xf32>
    %152 = vector.extract_strided_slice %149 {offsets = [0, 32], sizes = [2, 32], strides = [1, 1]} : vector<2x128xf32> to vector<2x32xf32>
    %153 = vector.extract_strided_slice %150 {offsets = [0, 64], sizes = [2, 32], strides = [1, 1]} : vector<2x128xf32> to vector<2x32xf32>
    %154 = vector.extract_strided_slice %149 {offsets = [0, 96], sizes = [2, 32], strides = [1, 1]} : vector<2x128xf32> to vector<2x32xf32>
    %155 = arith.mulf %152, %138 : vector<2x32xf32>
    %156 = arith.mulf %151, %153 : vector<2x32xf32>
    %157 = arith.addf %155, %156 : vector<2x32xf32>
    %158 = math.tanh %157 : vector<2x32xf32>
    %159 = arith.mulf %154, %158 : vector<2x32xf32>
    %c14 = arith.constant 14 : index
    %c0_33 = arith.constant 0 : index
    %160 = vector.load %arg11[%c14, %c0_33] : memref<16x32xf32, #tpu.memory_space<vmem>>, vector<2x32xf32>
    tpu.vector_store %arg11[%c14, %c0_33], %159 {strides = array<i32>} : memref<16x32xf32, #tpu.memory_space<vmem>>, vector<2x32xf32>,
    %c0_34 = arith.constant 0 : index
    %c0_35 = arith.constant 0 : index
    %161 = vector.load %arg11[%c0_34, %c0_35] : memref<16x32xf32, #tpu.memory_space<vmem>>, vector<16x32xf32>
    %c0_36 = arith.constant 0 : index
    %c0_37 = arith.constant 0 : index
    %162 = vector.load %arg5[%c0_36, %c0_37] : memref<32x128xf32, #tpu.memory_space<vmem>>, vector<32x128xf32>
    %c0_38 = arith.constant 0 : index
    %c0_39 = arith.constant 0 : index
    %163 = vector.load %arg6[%c0_38, %c0_39] : memref<32x128xf32, #tpu.memory_space<vmem>>, vector<32x128xf32>
    %c0_40 = arith.constant 0 : index
    %c0_41 = arith.constant 0 : index
    %164 = vector.load %arg7[%c0_40, %c0_41] : memref<1x128xf32, #tpu.memory_space<vmem>>, vector<1x128xf32>
    %cst_42 = arith.constant dense<0.000000e+00> : vector<16x128xf32>
    %165 = tpu.matmul %161, %162, %cst_42 {dimension_numbers = #tpu.dot_dimension_numbers<[1], [0], [0], [1], [0, 0, 1, 1], [], []>} : vector<16x32xf32>, vector<32x128xf32>, vector<16x128xf32> -> vector<16x128xf32>
    %166 = vector.broadcast %164 : vector<1x128xf32> to vector<16x128xf32>
    %167 = arith.addf %165, %166 : vector<16x128xf32>
    %cst_43 = arith.constant 0.000000e+00 : f32
    %168 = vector.broadcast %cst_43 : f32 to vector<2x32xf32>
    %cst_44 = arith.constant 0.000000e+00 : f32
    %169 = vector.broadcast %cst_44 : f32 to vector<2x32xf32>
    %170 = vector.extract_strided_slice %167 {offsets = [0, 0], sizes = [2, 128], strides = [1, 1]} : vector<16x128xf32> to vector<2x128xf32>
    %cst_45 = arith.constant dense<0.000000e+00> : vector<2x128xf32>
    %171 = tpu.matmul %168, %163, %cst_45 {dimension_numbers = #tpu.dot_dimension_numbers<[1], [0], [0], [1], [0, 0, 1, 1], [], []>} : vector<2x32xf32>, vector<32x128xf32>, vector<2x128xf32> -> vector<2x128xf32>
    %172 = arith.addf %170, %171 : vector<2x128xf32>
    %173 = arith.negf %172 : vector<2x128xf32>
    %174 = math.exp %173 : vector<2x128xf32>
    %cst_46 = arith.constant 1.000000e+00 : f32
    %175 = vector.broadcast %cst_46 : f32 to vector<2x128xf32>
    %176 = arith.addf %175, %174 : vector<2x128xf32>
    %177 = arith.divf %175, %176 : vector<2x128xf32>
    %178 = math.tanh %172 : vector<2x128xf32>
    %179 = vector.extract_strided_slice %177 {offsets = [0, 0], sizes = [2, 32], strides = [1, 1]} : vector<2x128xf32> to vector<2x32xf32>
    %180 = vector.extract_strided_slice %177 {offsets = [0, 32], sizes = [2, 32], strides = [1, 1]} : vector<2x128xf32> to vector<2x32xf32>
    %181 = vector.extract_strided_slice %178 {offsets = [0, 64], sizes = [2, 32], strides = [1, 1]} : vector<2x128xf32> to vector<2x32xf32>
    %182 = vector.extract_strided_slice %177 {offsets = [0, 96], sizes = [2, 32], strides = [1, 1]} : vector<2x128xf32> to vector<2x32xf32>
    %183 = arith.mulf %180, %169 : vector<2x32xf32>
    %184 = arith.mulf %179, %181 : vector<2x32xf32>
    %185 = arith.addf %183, %184 : vector<2x32xf32>
    %186 = math.tanh %185 : vector<2x32xf32>
    %187 = arith.mulf %182, %186 : vector<2x32xf32>
    %c0_47 = arith.constant 0 : index
    %c0_48 = arith.constant 0 : index
    %188 = vector.load %arg11[%c0_47, %c0_48] : memref<16x32xf32, #tpu.memory_space<vmem>>, vector<2x32xf32>
    tpu.vector_store %arg11[%c0_47, %c0_48], %187 {strides = array<i32>} : memref<16x32xf32, #tpu.memory_space<vmem>>, vector<2x32xf32>,
    %189 = vector.extract_strided_slice %167 {offsets = [2, 0], sizes = [2, 128], strides = [1, 1]} : vector<16x128xf32> to vector<2x128xf32>
    %cst_49 = arith.constant dense<0.000000e+00> : vector<2x128xf32>
    %190 = tpu.matmul %187, %163, %cst_49 {dimension_numbers = #tpu.dot_dimension_numbers<[1], [0], [0], [1], [0, 0, 1, 1], [], []>} : vector<2x32xf32>, vector<32x128xf32>, vector<2x128xf32> -> vector<2x128xf32>
    %191 = arith.addf %189, %190 : vector<2x128xf32>
    %192 = arith.negf %191 : vector<2x128xf32>
    %193 = math.exp %192 : vector<2x128xf32>
    %cst_50 = arith.constant 1.000000e+00 : f32
    %194 = vector.broadcast %cst_50 : f32 to vector<2x128xf32>
    %195 = arith.addf %194, %193 : vector<2x128xf32>
    %196 = arith.divf %194, %195 : vector<2x128xf32>
    %197 = math.tanh %191 : vector<2x128xf32>
    %198 = vector.extract_strided_slice %196 {offsets = [0, 0], sizes = [2, 32], strides = [1, 1]} : vector<2x128xf32> to vector<2x32xf32>
    %199 = vector.extract_strided_slice %196 {offsets = [0, 32], sizes = [2, 32], strides = [1, 1]} : vector<2x128xf32> to vector<2x32xf32>
    %200 = vector.extract_strided_slice %197 {offsets = [0, 64], sizes = [2, 32], strides = [1, 1]} : vector<2x128xf32> to vector<2x32xf32>
    %201 = vector.extract_strided_slice %196 {offsets = [0, 96], sizes = [2, 32], strides = [1, 1]} : vector<2x128xf32> to vector<2x32xf32>
    %202 = arith.mulf %199, %185 : vector<2x32xf32>
    %203 = arith.mulf %198, %200 : vector<2x32xf32>
    %204 = arith.addf %202, %203 : vector<2x32xf32>
    %205 = math.tanh %204 : vector<2x32xf32>
    %206 = arith.mulf %201, %205 : vector<2x32xf32>
    %c2_51 = arith.constant 2 : index
    %c0_52 = arith.constant 0 : index
    %207 = vector.load %arg11[%c2_51, %c0_52] : memref<16x32xf32, #tpu.memory_space<vmem>>, vector<2x32xf32>
    tpu.vector_store %arg11[%c2_51, %c0_52], %206 {strides = array<i32>} : memref<16x32xf32, #tpu.memory_space<vmem>>, vector<2x32xf32>,
    %208 = vector.extract_strided_slice %167 {offsets = [4, 0], sizes = [2, 128], strides = [1, 1]} : vector<16x128xf32> to vector<2x128xf32>
    %cst_53 = arith.constant dense<0.000000e+00> : vector<2x128xf32>
    %209 = tpu.matmul %206, %163, %cst_53 {dimension_numbers = #tpu.dot_dimension_numbers<[1], [0], [0], [1], [0, 0, 1, 1], [], []>} : vector<2x32xf32>, vector<32x128xf32>, vector<2x128xf32> -> vector<2x128xf32>
    %210 = arith.addf %208, %209 : vector<2x128xf32>
    %211 = arith.negf %210 : vector<2x128xf32>
    %212 = math.exp %211 : vector<2x128xf32>
    %cst_54 = arith.constant 1.000000e+00 : f32
    %213 = vector.broadcast %cst_54 : f32 to vector<2x128xf32>
    %214 = arith.addf %213, %212 : vector<2x128xf32>
    %215 = arith.divf %213, %214 : vector<2x128xf32>
    %216 = math.tanh %210 : vector<2x128xf32>
    %217 = vector.extract_strided_slice %215 {offsets = [0, 0], sizes = [2, 32], strides = [1, 1]} : vector<2x128xf32> to vector<2x32xf32>
    %218 = vector.extract_strided_slice %215 {offsets = [0, 32], sizes = [2, 32], strides = [1, 1]} : vector<2x128xf32> to vector<2x32xf32>
    %219 = vector.extract_strided_slice %216 {offsets = [0, 64], sizes = [2, 32], strides = [1, 1]} : vector<2x128xf32> to vector<2x32xf32>
    %220 = vector.extract_strided_slice %215 {offsets = [0, 96], sizes = [2, 32], strides = [1, 1]} : vector<2x128xf32> to vector<2x32xf32>
    %221 = arith.mulf %218, %204 : vector<2x32xf32>
    %222 = arith.mulf %217, %219 : vector<2x32xf32>
    %223 = arith.addf %221, %222 : vector<2x32xf32>
    %224 = math.tanh %223 : vector<2x32xf32>
    %225 = arith.mulf %220, %224 : vector<2x32xf32>
    %c4_55 = arith.constant 4 : index
    %c0_56 = arith.constant 0 : index
    %226 = vector.load %arg11[%c4_55, %c0_56] : memref<16x32xf32, #tpu.memory_space<vmem>>, vector<2x32xf32>
    tpu.vector_store %arg11[%c4_55, %c0_56], %225 {strides = array<i32>} : memref<16x32xf32, #tpu.memory_space<vmem>>, vector<2x32xf32>,
    %227 = vector.extract_strided_slice %167 {offsets = [6, 0], sizes = [2, 128], strides = [1, 1]} : vector<16x128xf32> to vector<2x128xf32>
    %cst_57 = arith.constant dense<0.000000e+00> : vector<2x128xf32>
    %228 = tpu.matmul %225, %163, %cst_57 {dimension_numbers = #tpu.dot_dimension_numbers<[1], [0], [0], [1], [0, 0, 1, 1], [], []>} : vector<2x32xf32>, vector<32x128xf32>, vector<2x128xf32> -> vector<2x128xf32>
    %229 = arith.addf %227, %228 : vector<2x128xf32>
    %230 = arith.negf %229 : vector<2x128xf32>
    %231 = math.exp %230 : vector<2x128xf32>
    %cst_58 = arith.constant 1.000000e+00 : f32
    %232 = vector.broadcast %cst_58 : f32 to vector<2x128xf32>
    %233 = arith.addf %232, %231 : vector<2x128xf32>
    %234 = arith.divf %232, %233 : vector<2x128xf32>
    %235 = math.tanh %229 : vector<2x128xf32>
    %236 = vector.extract_strided_slice %234 {offsets = [0, 0], sizes = [2, 32], strides = [1, 1]} : vector<2x128xf32> to vector<2x32xf32>
    %237 = vector.extract_strided_slice %234 {offsets = [0, 32], sizes = [2, 32], strides = [1, 1]} : vector<2x128xf32> to vector<2x32xf32>
    %238 = vector.extract_strided_slice %235 {offsets = [0, 64], sizes = [2, 32], strides = [1, 1]} : vector<2x128xf32> to vector<2x32xf32>
    %239 = vector.extract_strided_slice %234 {offsets = [0, 96], sizes = [2, 32], strides = [1, 1]} : vector<2x128xf32> to vector<2x32xf32>
    %240 = arith.mulf %237, %223 : vector<2x32xf32>
    %241 = arith.mulf %236, %238 : vector<2x32xf32>
    %242 = arith.addf %240, %241 : vector<2x32xf32>
    %243 = math.tanh %242 : vector<2x32xf32>
    %244 = arith.mulf %239, %243 : vector<2x32xf32>
    %c6_59 = arith.constant 6 : index
    %c0_60 = arith.constant 0 : index
    %245 = vector.load %arg11[%c6_59, %c0_60] : memref<16x32xf32, #tpu.memory_space<vmem>>, vector<2x32xf32>
    tpu.vector_store %arg11[%c6_59, %c0_60], %244 {strides = array<i32>} : memref<16x32xf32, #tpu.memory_space<vmem>>, vector<2x32xf32>,
    %246 = vector.extract_strided_slice %167 {offsets = [8, 0], sizes = [2, 128], strides = [1, 1]} : vector<16x128xf32> to vector<2x128xf32>
    %cst_61 = arith.constant dense<0.000000e+00> : vector<2x128xf32>
    %247 = tpu.matmul %244, %163, %cst_61 {dimension_numbers = #tpu.dot_dimension_numbers<[1], [0], [0], [1], [0, 0, 1, 1], [], []>} : vector<2x32xf32>, vector<32x128xf32>, vector<2x128xf32> -> vector<2x128xf32>
    %248 = arith.addf %246, %247 : vector<2x128xf32>
    %249 = arith.negf %248 : vector<2x128xf32>
    %250 = math.exp %249 : vector<2x128xf32>
    %cst_62 = arith.constant 1.000000e+00 : f32
    %251 = vector.broadcast %cst_62 : f32 to vector<2x128xf32>
    %252 = arith.addf %251, %250 : vector<2x128xf32>
    %253 = arith.divf %251, %252 : vector<2x128xf32>
    %254 = math.tanh %248 : vector<2x128xf32>
    %255 = vector.extract_strided_slice %253 {offsets = [0, 0], sizes = [2, 32], strides = [1, 1]} : vector<2x128xf32> to vector<2x32xf32>
    %256 = vector.extract_strided_slice %253 {offsets = [0, 32], sizes = [2, 32], strides = [1, 1]} : vector<2x128xf32> to vector<2x32xf32>
    %257 = vector.extract_strided_slice %254 {offsets = [0, 64], sizes = [2, 32], strides = [1, 1]} : vector<2x128xf32> to vector<2x32xf32>
    %258 = vector.extract_strided_slice %253 {offsets = [0, 96], sizes = [2, 32], strides = [1, 1]} : vector<2x128xf32> to vector<2x32xf32>
    %259 = arith.mulf %256, %242 : vector<2x32xf32>
    %260 = arith.mulf %255, %257 : vector<2x32xf32>
    %261 = arith.addf %259, %260 : vector<2x32xf32>
    %262 = math.tanh %261 : vector<2x32xf32>
    %263 = arith.mulf %258, %262 : vector<2x32xf32>
    %c8_63 = arith.constant 8 : index
    %c0_64 = arith.constant 0 : index
    %264 = vector.load %arg11[%c8_63, %c0_64] : memref<16x32xf32, #tpu.memory_space<vmem>>, vector<2x32xf32>
    tpu.vector_store %arg11[%c8_63, %c0_64], %263 {strides = array<i32>} : memref<16x32xf32, #tpu.memory_space<vmem>>, vector<2x32xf32>,
    %265 = vector.extract_strided_slice %167 {offsets = [10, 0], sizes = [2, 128], strides = [1, 1]} : vector<16x128xf32> to vector<2x128xf32>
    %cst_65 = arith.constant dense<0.000000e+00> : vector<2x128xf32>
    %266 = tpu.matmul %263, %163, %cst_65 {dimension_numbers = #tpu.dot_dimension_numbers<[1], [0], [0], [1], [0, 0, 1, 1], [], []>} : vector<2x32xf32>, vector<32x128xf32>, vector<2x128xf32> -> vector<2x128xf32>
    %267 = arith.addf %265, %266 : vector<2x128xf32>
    %268 = arith.negf %267 : vector<2x128xf32>
    %269 = math.exp %268 : vector<2x128xf32>
    %cst_66 = arith.constant 1.000000e+00 : f32
    %270 = vector.broadcast %cst_66 : f32 to vector<2x128xf32>
    %271 = arith.addf %270, %269 : vector<2x128xf32>
    %272 = arith.divf %270, %271 : vector<2x128xf32>
    %273 = math.tanh %267 : vector<2x128xf32>
    %274 = vector.extract_strided_slice %272 {offsets = [0, 0], sizes = [2, 32], strides = [1, 1]} : vector<2x128xf32> to vector<2x32xf32>
    %275 = vector.extract_strided_slice %272 {offsets = [0, 32], sizes = [2, 32], strides = [1, 1]} : vector<2x128xf32> to vector<2x32xf32>
    %276 = vector.extract_strided_slice %273 {offsets = [0, 64], sizes = [2, 32], strides = [1, 1]} : vector<2x128xf32> to vector<2x32xf32>
    %277 = vector.extract_strided_slice %272 {offsets = [0, 96], sizes = [2, 32], strides = [1, 1]} : vector<2x128xf32> to vector<2x32xf32>
    %278 = arith.mulf %275, %261 : vector<2x32xf32>
    %279 = arith.mulf %274, %276 : vector<2x32xf32>
    %280 = arith.addf %278, %279 : vector<2x32xf32>
    %281 = math.tanh %280 : vector<2x32xf32>
    %282 = arith.mulf %277, %281 : vector<2x32xf32>
    %c10_67 = arith.constant 10 : index
    %c0_68 = arith.constant 0 : index
    %283 = vector.load %arg11[%c10_67, %c0_68] : memref<16x32xf32, #tpu.memory_space<vmem>>, vector<2x32xf32>
    tpu.vector_store %arg11[%c10_67, %c0_68], %282 {strides = array<i32>} : memref<16x32xf32, #tpu.memory_space<vmem>>, vector<2x32xf32>,
    %284 = vector.extract_strided_slice %167 {offsets = [12, 0], sizes = [2, 128], strides = [1, 1]} : vector<16x128xf32> to vector<2x128xf32>
    %cst_69 = arith.constant dense<0.000000e+00> : vector<2x128xf32>
    %285 = tpu.matmul %282, %163, %cst_69 {dimension_numbers = #tpu.dot_dimension_numbers<[1], [0], [0], [1], [0, 0, 1, 1], [], []>} : vector<2x32xf32>, vector<32x128xf32>, vector<2x128xf32> -> vector<2x128xf32>
    %286 = arith.addf %284, %285 : vector<2x128xf32>
    %287 = arith.negf %286 : vector<2x128xf32>
    %288 = math.exp %287 : vector<2x128xf32>
    %cst_70 = arith.constant 1.000000e+00 : f32
    %289 = vector.broadcast %cst_70 : f32 to vector<2x128xf32>
    %290 = arith.addf %289, %288 : vector<2x128xf32>
    %291 = arith.divf %289, %290 : vector<2x128xf32>
    %292 = math.tanh %286 : vector<2x128xf32>
    %293 = vector.extract_strided_slice %291 {offsets = [0, 0], sizes = [2, 32], strides = [1, 1]} : vector<2x128xf32> to vector<2x32xf32>
    %294 = vector.extract_strided_slice %291 {offsets = [0, 32], sizes = [2, 32], strides = [1, 1]} : vector<2x128xf32> to vector<2x32xf32>
    %295 = vector.extract_strided_slice %292 {offsets = [0, 64], sizes = [2, 32], strides = [1, 1]} : vector<2x128xf32> to vector<2x32xf32>
    %296 = vector.extract_strided_slice %291 {offsets = [0, 96], sizes = [2, 32], strides = [1, 1]} : vector<2x128xf32> to vector<2x32xf32>
    %297 = arith.mulf %294, %280 : vector<2x32xf32>
    %298 = arith.mulf %293, %295 : vector<2x32xf32>
    %299 = arith.addf %297, %298 : vector<2x32xf32>
    %300 = math.tanh %299 : vector<2x32xf32>
    %301 = arith.mulf %296, %300 : vector<2x32xf32>
    %c12_71 = arith.constant 12 : index
    %c0_72 = arith.constant 0 : index
    %302 = vector.load %arg11[%c12_71, %c0_72] : memref<16x32xf32, #tpu.memory_space<vmem>>, vector<2x32xf32>
    tpu.vector_store %arg11[%c12_71, %c0_72], %301 {strides = array<i32>} : memref<16x32xf32, #tpu.memory_space<vmem>>, vector<2x32xf32>,
    %303 = vector.extract_strided_slice %167 {offsets = [14, 0], sizes = [2, 128], strides = [1, 1]} : vector<16x128xf32> to vector<2x128xf32>
    %cst_73 = arith.constant dense<0.000000e+00> : vector<2x128xf32>
    %304 = tpu.matmul %301, %163, %cst_73 {dimension_numbers = #tpu.dot_dimension_numbers<[1], [0], [0], [1], [0, 0, 1, 1], [], []>} : vector<2x32xf32>, vector<32x128xf32>, vector<2x128xf32> -> vector<2x128xf32>
    %305 = arith.addf %303, %304 : vector<2x128xf32>
    %306 = arith.negf %305 : vector<2x128xf32>
    %307 = math.exp %306 : vector<2x128xf32>
    %cst_74 = arith.constant 1.000000e+00 : f32
    %308 = vector.broadcast %cst_74 : f32 to vector<2x128xf32>
    %309 = arith.addf %308, %307 : vector<2x128xf32>
    %310 = arith.divf %308, %309 : vector<2x128xf32>
    %311 = math.tanh %305 : vector<2x128xf32>
    %312 = vector.extract_strided_slice %310 {offsets = [0, 0], sizes = [2, 32], strides = [1, 1]} : vector<2x128xf32> to vector<2x32xf32>
    %313 = vector.extract_strided_slice %310 {offsets = [0, 32], sizes = [2, 32], strides = [1, 1]} : vector<2x128xf32> to vector<2x32xf32>
    %314 = vector.extract_strided_slice %311 {offsets = [0, 64], sizes = [2, 32], strides = [1, 1]} : vector<2x128xf32> to vector<2x32xf32>
    %315 = vector.extract_strided_slice %310 {offsets = [0, 96], sizes = [2, 32], strides = [1, 1]} : vector<2x128xf32> to vector<2x32xf32>
    %316 = arith.mulf %313, %299 : vector<2x32xf32>
    %317 = arith.mulf %312, %314 : vector<2x32xf32>
    %318 = arith.addf %316, %317 : vector<2x32xf32>
    %319 = math.tanh %318 : vector<2x32xf32>
    %320 = arith.mulf %315, %319 : vector<2x32xf32>
    %c14_75 = arith.constant 14 : index
    %c0_76 = arith.constant 0 : index
    %321 = vector.load %arg11[%c14_75, %c0_76] : memref<16x32xf32, #tpu.memory_space<vmem>>, vector<2x32xf32>
    tpu.vector_store %arg11[%c14_75, %c0_76], %320 {strides = array<i32>} : memref<16x32xf32, #tpu.memory_space<vmem>>, vector<2x32xf32>,
    %c0_77 = arith.constant 0 : index
    %c0_78 = arith.constant 0 : index
    %322 = vector.load %arg11[%c0_77, %c0_78] : memref<16x32xf32, #tpu.memory_space<vmem>>, vector<16x32xf32>
    %c0_79 = arith.constant 0 : index
    %c0_80 = arith.constant 0 : index
    %323 = vector.load %arg8[%c0_79, %c0_80] : memref<1x32xf32, #tpu.memory_space<vmem>>, vector<1x32xf32>
    %324 = vector.broadcast %323 : vector<1x32xf32> to vector<16x32xf32>
    %325 = arith.mulf %322, %324 : vector<16x32xf32>
    %cst_81 = arith.constant dense<0.000000e+00> : vector<16xf32>
    %326 = vector.multi_reduction <add>, %325, %cst_81 [1] : vector<16x32xf32> to vector<16xf32>
    %327 = vector.shape_cast %326 : vector<16xf32> to vector<16x1xf32>
    %c0_82 = arith.constant 0 : index
    %c0_83 = arith.constant 0 : index
    %328 = vector.load %arg9[%c0_82, %c0_83] : memref<1x1xf32, #tpu.memory_space<vmem>>, vector<1x1xf32>
    %329 = vector.broadcast %328 : vector<1x1xf32> to vector<16x1xf32>
    %330 = arith.addf %327, %329 : vector<16x1xf32>
    %c0_84 = arith.constant 0 : index
    %c0_85 = arith.constant 0 : index
    %331 = vector.load %arg10[%c0_84, %c0_85] : memref<16x1xf32, #tpu.memory_space<vmem>>, vector<16x1xf32>
    tpu.vector_store %arg10[%c0_84, %c0_85], %330 {strides = array<i32>} : memref<16x1xf32, #tpu.memory_space<vmem>>, vector<16x1xf32>,
    return
  }
  func.func @transform_0(%arg0: i32) -> (i32, i32) {
    %c0_i32 = arith.constant 0 : i32
    %c0_i32_0 = arith.constant 0 : i32
    %c0_i32_1 = arith.constant 0 : i32
    return %c0_i32, %c0_i32_0 : i32, i32
  }
  func.func @transform_1(%arg0: i32) -> (i32, i32) {
    %c0_i32 = arith.constant 0 : i32
    %c0_i32_0 = arith.constant 0 : i32
    %c0_i32_1 = arith.constant 0 : i32
    return %c0_i32, %c0_i32_0 : i32, i32
  }
  func.func @transform_2(%arg0: i32) -> (i32, i32) {
    %c0_i32 = arith.constant 0 : i32
    %c0_i32_0 = arith.constant 0 : i32
    %c0_i32_1 = arith.constant 0 : i32
    return %c0_i32, %c0_i32_0 : i32, i32
  }
  func.func @transform_3(%arg0: i32) -> (i32, i32) {
    %c0_i32 = arith.constant 0 : i32
    %c0_i32_0 = arith.constant 0 : i32
    %c0_i32_1 = arith.constant 0 : i32
    return %c0_i32, %c0_i32_0 : i32, i32
  }
  func.func @transform_4(%arg0: i32) -> (i32, i32) {
    %c0_i32 = arith.constant 0 : i32
    %c0_i32_0 = arith.constant 0 : i32
    %c0_i32_1 = arith.constant 0 : i32
    return %c0_i32, %c0_i32_0 : i32, i32
  }
  func.func @transform_5(%arg0: i32) -> (i32, i32) {
    %c0_i32 = arith.constant 0 : i32
    %c0_i32_0 = arith.constant 0 : i32
    %c0_i32_1 = arith.constant 0 : i32
    return %c0_i32, %c0_i32_0 : i32, i32
  }
  func.func @transform_6(%arg0: i32) -> (i32, i32) {
    %c0_i32 = arith.constant 0 : i32
    %c0_i32_0 = arith.constant 0 : i32
    %c0_i32_1 = arith.constant 0 : i32
    return %c0_i32, %c0_i32_0 : i32, i32
  }
  func.func @transform_7(%arg0: i32) -> (i32, i32) {
    %c0_i32 = arith.constant 0 : i32
    %c0_i32_0 = arith.constant 0 : i32
    %c0_i32_1 = arith.constant 0 : i32
    return %c0_i32, %c0_i32_0 : i32, i32
  }
  func.func @transform_8(%arg0: i32) -> (i32, i32) {
    %c0_i32 = arith.constant 0 : i32
    %c0_i32_0 = arith.constant 0 : i32
    %c0_i32_1 = arith.constant 0 : i32
    return %c0_i32, %c0_i32_0 : i32, i32
  }
  func.func @transform_9(%arg0: i32) -> (i32, i32) {
    %c0_i32 = arith.constant 0 : i32
    %c0_i32_0 = arith.constant 0 : i32
    %c0_i32_1 = arith.constant 0 : i32
    return %c0_i32, %c0_i32_0 : i32, i32
  }
}

</mosaic_0001>

<llo_original>
// kernel: tpu_custom_call.1
$region0: #{tpu_custom_call.1}
  #allocation0 [shape = 'u32[]', space=smem, size = 0x4, offset = 0x4, fixed_abs, tag = 'smem constant byte address 0x4 - core index']
  #allocation1 [shape = 'u32[144,128]{1,0:T(1,128)}', space=vmem, size = 0x12000, scoped, tag = 'internal scratch']
  #allocation2 [shape = 'f32[16,32]{1,0:T(8,128)}', space=vmem, size = 0x2000, scoped, tag = 'scratch operand']
  #allocation3 [shape = 'f32[1,1]{1,0:T(1,128)S(1)}', space=vmem, size = 0x200, scoped, tag = 'scoped memory for tpu_custom_call.1']
  %s0 = inlined_call_operand.hbm [shape: f32[16,16], index: 0, kind: input, shape index: {}]
  %s1 = inlined_call_operand.hbm [shape: f32[16,128], index: 1, kind: input, shape index: {}]
  %s2 = inlined_call_operand.hbm [shape: f32[32,128], index: 2, kind: input, shape index: {}]
  %s3 = inlined_call_operand.vmem [shape: f32[1,128], index: 3, kind: input, shape index: {}]
  %s4 = inlined_call_operand.hbm [shape: f32[32,128], index: 4, kind: input, shape index: {}]
  %s5 = inlined_call_operand.hbm [shape: f32[32,128], index: 5, kind: input, shape index: {}]
  %s6 = inlined_call_operand.vmem [shape: f32[1,128], index: 6, kind: input, shape index: {}]
  %s7 = inlined_call_operand.vmem [shape: f32[1,32], index: 7, kind: input, shape index: {}]
  %s8 = inlined_call_operand.<no memory space> [shape: f32[1,1], index: 8, kind: input, shape index: {}]
  %s9 = inlined_call_operand.vmem [shape: f32[16,1], index: 9, kind: output, shape index: {}]
  %s10 = sld [smem:[#allocation0]]
  $region66: #{tpu_custom_call.1} parent=0
    _
  %s12 = ssub.s32 1, %s10
  %s13 = scalar_select 0, %s12, %s10
  %v14 = vstv %s8
  %15 = vst [vmem:[#allocation3] sm:$0x1] %v14
  $region1: #{tpu_custom_call.1} parent=0
    #allocation4 [shape = 'u8[8192]{0}', space=vmem, size = 0x2000, scoped, tag = 'input window, operand 0, single buffered']
    #allocation5 [shape = 's32[1]{0}', space=sflag, size = 0x4, scoped, tag = 'scoped memory for tpu_custom_call.1']
    #allocation6 [shape = 'u8[8192]{0}', space=vmem, size = 0x2000, scoped, tag = 'input window, operand 1, single buffered']
    #allocation7 [shape = 's32[1]{0}', space=sflag, size = 0x4, scoped, tag = 'scoped memory for tpu_custom_call.1']
    #allocation8 [shape = 'u8[16384]{0}', space=vmem, size = 0x4000, scoped, tag = 'input window, operand 2, single buffered']
    #allocation9 [shape = 'u8[16384]{0}', space=vmem, size = 0x4000, scoped, tag = 'input window, operand 4, single buffered']
    #allocation10 [shape = 's32[1]{0}', space=sflag, size = 0x4, scoped, tag = 'scoped memory for tpu_custom_call.1']
    #allocation11 [shape = 'u8[16384]{0}', space=vmem, size = 0x4000, scoped, tag = 'input window, operand 5, single buffered']
    %16 = vsyncpa [#allocation5], 0
    %17 = vsyncpa [#allocation7], 0
    %18 = vsyncpa [#allocation10], 0
    // Predicated region
    $region2: #{tpu_custom_call.1} parent=1 // pred_check
      _
    $region3: #{tpu_custom_call.1} parent=1 // pred_check_branch
      %20 = sbr.rel (0) target = $region5
    $region4: #{tpu_custom_call.1} parent=1 // pred_region
      %s22 = ssub.s32 256, 256
      %23 = vsyncadd [#allocation5], %s22
      %s24 = sshll.u32 [#allocation4], 4
      %s25 = int_to_ptr.vmem [resolvable:$true] %s24
      %30 = dma.hbm_to_vmem [thread:$0]  %s0, 256, %s25, [#allocation5], 128, 128, 8
    $region5: #{tpu_custom_call.1} parent=1 // pred_fallthru
      _
    // Predicated region
    $region6: #{tpu_custom_call.1} parent=1 // pred_check
      _
    $region7: #{tpu_custom_call.1} parent=1 // pred_check_branch
      %32 = sbr.rel (0) target = $region9
    $region8: #{tpu_custom_call.1} parent=1 // pred_region
      %s34 = ssub.s32 256, 256
      %35 = vsyncadd [#allocation7], %s34
      %s36 = sshll.u32 [#allocation6], 4
      %s37 = int_to_ptr.vmem [resolvable:$true] %s36
      %42 = dma.hbm_to_vmem [thread:$0]  %s1, 256, %s37, [#allocation7], 128, 128, 8
    $region9: #{tpu_custom_call.1} parent=1 // pred_fallthru
      _
    // Predicated region
    $region10: #{tpu_custom_call.1} parent=1 // pred_check
      _
    $region11: #{tpu_custom_call.1} parent=1 // pred_check_branch
      %44 = sbr.rel (0) target = $region13
    $region12: #{tpu_custom_call.1} parent=1 // pred_region
      %s46 = ssub.s32 512, 512
      %47 = vsyncadd [#allocation7], %s46
      %s48 = sshll.u32 [#allocation8], 4
      %s49 = int_to_ptr.vmem [resolvable:$true] %s48
      %54 = dma.hbm_to_vmem [thread:$0]  %s2, 512, %s49, [#allocation7], 128, 128, 8
    $region13: #{tpu_custom_call.1} parent=1 // pred_fallthru
      _
    // Predicated region
    $region14: #{tpu_custom_call.1} parent=1 // pred_check
      _
    $region15: #{tpu_custom_call.1} parent=1 // pred_check_branch
      %56 = sbr.rel (0) target = $region17
    $region16: #{tpu_custom_call.1} parent=1 // pred_region
      _
    $region17: #{tpu_custom_call.1} parent=1 // pred_fallthru
      _
    // Predicated region
    $region18: #{tpu_custom_call.1} parent=1 // pred_check
      _
    $region19: #{tpu_custom_call.1} parent=1 // pred_check_branch
      %58 = sbr.rel (0) target = $region21
    $region20: #{tpu_custom_call.1} parent=1 // pred_region
      %s60 = ssub.s32 512, 512
      %61 = vsyncadd [#allocation10], %s60
      %s62 = sshll.u32 [#allocation9], 4
      %s63 = int_to_ptr.vmem [resolvable:$true] %s62
      %68 = dma.hbm_to_vmem [thread:$0]  %s4, 512, %s63, [#allocation10], 128, 128, 8
    $region21: #{tpu_custom_call.1} parent=1 // pred_fallthru
      _
    // Predicated region
    $region22: #{tpu_custom_call.1} parent=1 // pred_check
      _
    $region23: #{tpu_custom_call.1} parent=1 // pred_check_branch
      %70 = sbr.rel (0) target = $region25
    $region24: #{tpu_custom_call.1} parent=1 // pred_region
      %s72 = ssub.s32 512, 512
      %73 = vsyncadd [#allocation10], %s72
      %s74 = sshll.u32 [#allocation11], 4
      %s75 = int_to_ptr.vmem [resolvable:$true] %s74
      %80 = dma.hbm_to_vmem [thread:$0]  %s5, 512, %s75, [#allocation10], 128, 128, 8
    $region25: #{tpu_custom_call.1} parent=1 // pred_fallthru
      _
    // Predicated region
    $region26: #{tpu_custom_call.1} parent=1 // pred_check
      _
    $region27: #{tpu_custom_call.1} parent=1 // pred_check_branch
      %82 = sbr.rel (0) target = $region29
    $region28: #{tpu_custom_call.1} parent=1 // pred_region
      _
    $region29: #{tpu_custom_call.1} parent=1 // pred_fallthru
      _
    // Predicated region
    $region30: #{tpu_custom_call.1} parent=1 // pred_check
      _
    $region31: #{tpu_custom_call.1} parent=1 // pred_check_branch
      %84 = sbr.rel (0) target = $region33
    $region32: #{tpu_custom_call.1} parent=1 // pred_region
      _
    $region33: #{tpu_custom_call.1} parent=1 // pred_fallthru
      _
    // Predicated region
    $region34: #{tpu_custom_call.1} parent=1 // pred_check
      _
    $region35: #{tpu_custom_call.1} parent=1 // pred_check_branch
      %86 = sbr.rel (0) target = $region37
    $region36: #{tpu_custom_call.1} parent=1 // pred_region
      _
    $region37: #{tpu_custom_call.1} parent=1 // pred_fallthru
      _
    // Predicated region
    $region38: #{tpu_custom_call.1} parent=1 // pred_check
      _
    $region39: #{tpu_custom_call.1} parent=1 // pred_check_branch
      %88 = sbr.rel (0) target = $region41
    $region40: #{tpu_custom_call.1} parent=1 // pred_region
      %89 = dma.done [#allocation5], 256
    $region41: #{tpu_custom_call.1} parent=1 // pred_fallthru
      _
    // Predicated region
    $region42: #{tpu_custom_call.1} parent=1 // pred_check
      _
    $region43: #{tpu_custom_call.1} parent=1 // pred_check_branch
      %91 = sbr.rel (0) target = $region45
    $region44: #{tpu_custom_call.1} parent=1 // pred_region
      %92 = dma.done [#allocation7], 256
    $region45: #{tpu_custom_call.1} parent=1 // pred_fallthru
      _
    // Predicated region
    $region46: #{tpu_custom_call.1} parent=1 // pred_check
      _
    $region47: #{tpu_custom_call.1} parent=1 // pred_check_branch
      %94 = sbr.rel (0) target = $region49
    $region48: #{tpu_custom_call.1} parent=1 // pred_region
      %95 = dma.done [#allocation7], 512
    $region49: #{tpu_custom_call.1} parent=1 // pred_fallthru
      _
    // Predicated region
    $region50: #{tpu_custom_call.1} parent=1 // pred_check
      _
    $region51: #{tpu_custom_call.1} parent=1 // pred_check_branch
      %97 = sbr.rel (0) target = $region53
    $region52: #{tpu_custom_call.1} parent=1 // pred_region
      %98 = dma.done [#allocation10], 512
    $region53: #{tpu_custom_call.1} parent=1 // pred_fallthru
      _
    // Predicated region
    $region54: #{tpu_custom_call.1} parent=1 // pred_check
      _
    $region55: #{tpu_custom_call.1} parent=1 // pred_check_branch
      %100 = sbr.rel (0) target = $region57
    $region56: #{tpu_custom_call.1} parent=1 // pred_region
      %101 = dma.done [#allocation10], 512
    $region57: #{tpu_custom_call.1} parent=1 // pred_fallthru
      _
    %v102 = vld [vmem:[#allocation4] sm:$0xff]
    %v103 = vld [vmem:[#allocation4 + $0x8] sm:$0xff]
    %v104 = vld [vmem:[#allocation6] sm:$0xff]
    %v105 = vld [vmem:[#allocation6 + $0x8] sm:$0xff]
    %v106 = vld [vmem:[#allocation8] sm:$0xff]
    %v107 = vld [vmem:[#allocation8 + $0x8] sm:$0xff]
    %v108 = vld [vmem:[#allocation8 + $0x10] sm:$0xff]
    %v109 = vld [vmem:[#allocation8 + $0x18] sm:$0xff]
    %v110 = vld [vmem:[%s3] sm:$0x1]
    %v112 = vlaneseq
    %v113 = vshrl.u32 %v112, 7
    %v114 = vsub.s32 0, %v113
    %v115 = vrot.slane %v110, %v114
    %vm117 = vcmask 130048
    %v119 = vsel %vm117, %v102, 0
    %v122 = vsel %vm117, %v103, 0
    %124 = vmatprep.subr.mxu0 0.0
    %125 = vmatpush1.msra.mxu0 %v104
    %126 = vmatprep.subr.mxu0 0.0
    %127 = vmatpush1.msra.mxu0 %v105
    %128 = vmatprep.subr.mxu0 0.0
    %129 = vmatpush1.msra.mxu0 0.0
    %130 = vmatprep.subr.mxu0 0.0
    %131 = vmatpush1.msra.mxu0 0.0
    %132 = vmatprep.subr.mxu0 0.0
    %133 = vmatpush1.msra.mxu0 0.0
    %134 = vmatprep.subr.mxu0 0.0
    %135 = vmatpush1.msra.mxu0 0.0
    %136 = vmatprep.subr.mxu0 0.0
    %137 = vmatpush1.msra.mxu0 0.0
    %138 = vmatprep.subr.mxu0 0.0
    %139 = vmatpush1.msra.mxu0 0.0
    %140 = vmatprep.subr.mxu0 0.0
    %141 = vmatpush1.msra.mxu0 0.0
    %142 = vmatprep.subr.mxu0 0.0
    %143 = vmatpush1.msra.mxu0 0.0
    %144 = vmatprep.subr.mxu0 0.0
    %145 = vmatpush1.msra.mxu0 0.0
    %146 = vmatprep.subr.mxu0 0.0
    %147 = vmatpush1.msra.mxu0 0.0
    %148 = vmatprep.subr.mxu0 0.0
    %149 = vmatpush1.msra.mxu0 0.0
    %150 = vmatprep.subr.mxu0 0.0
    %151 = vmatpush1.msra.mxu0 0.0
    %152 = vmatprep.subr.mxu0 0.0
    %153 = vmatpush1.msra.mxu0 0.0
    %154 = vmatprep.subr.mxu0 0.0
    %155 = vmatpush1.msra.mxu0 0.0
    %156 = vmatprep.subr.mxu0 0.0
    %157 = vmatpush1.msra.mxu0 0.0
    %158 = vmatprep.subr.mxu0 0.0
    %159 = vmatpush1.msra.mxu0 0.0
    %160 = vmatprep.subr.mxu0 0.0
    %161 = vmatpush1.msra.mxu0 0.0
    %162 = vmatprep.subr.mxu0 0.0
    %163 = vmatpush1.msra.mxu0 0.0
    %164 = vmatprep.subr.mxu0 0.0
    %165 = vmatpush1.msra.mxu0 0.0
    %166 = vmatprep.subr.mxu0 0.0
    %167 = vmatpush1.msra.mxu0 0.0
    %168 = vmatprep.subr.mxu0 0.0
    %169 = vmatpush1.msra.mxu0 0.0
    %170 = vmatprep.subr.mxu0 0.0
    %171 = vmatpush1.msra.mxu0 0.0
    %172 = vmatprep.subr.mxu0 0.0
    %173 = vmatpush1.msra.mxu0 0.0
    %174 = vmatprep.subr.mxu0 0.0
    %175 = vmatpush1.msra.mxu0 0.0
    %176 = vmatprep.subr.mxu0 0.0
    %177 = vmatpush1.msra.mxu0 0.0
    %178 = vmatprep.subr.mxu0 0.0
    %179 = vmatpush1.msra.mxu0 0.0
    %180 = vmatprep.subr.mxu0 0.0
    %181 = vmatpush1.msra.mxu0 0.0
    %182 = vmatprep.subr.mxu0 0.0
    %183 = vmatpush1.msra.mxu0 0.0
    %184 = vmatprep.subr.mxu0 0.0
    %185 = vmatpush1.msra.mxu0 0.0
    %186 = vmatprep.subr.mxu0 0.0
    %187 = vmatpush1.msra.mxu0 0.0
    %188 = vmatprep.mubr.f32.mxu0 0.0
    %189 = vmatmul.mubr.f32.gmra.mrb[0].mxu0 %v119
    %v190 = vpop.f32.mrb[0].mxu0
    %v191 = vadd.f32 %v115, %v190
    %v192 = vpop.f32.mrb[0].mxu0
    %193 = vmatprep.mubr.f32.mxu0 0.0
    %194 = vmatmul.mubr.f32.gmra.mrb[0].mxu0 %v122
    %v195 = vpop.f32.mrb[0].mxu0
    %v196 = vadd.f32 %v115, %v195
    %v197 = vpop.f32.mrb[0].mxu0
    %198 = vdwg.mxu0
    %vm199 = vcmask 261120
    %v201 = vsel %vm199, 0.0, 0
    %203 = vmatprep.subr.mxu0 0.0
    %204 = vmatpush1.msra.mxu0 %v106
    %205 = vmatprep.subr.mxu0 0.0
    %206 = vmatpush1.msra.mxu0 %v107
    %207 = vmatprep.subr.mxu0 0.0
    %208 = vmatpush1.msra.mxu0 %v108
    %209 = vmatprep.subr.mxu0 0.0
    %210 = vmatpush1.msra.mxu0 %v109
    %211 = vmatprep.subr.mxu0 0.0
    %212 = vmatpush1.msra.mxu0 0.0
    %213 = vmatprep.subr.mxu0 0.0
    %214 = vmatpush1.msra.mxu0 0.0
    %215 = vmatprep.subr.mxu0 0.0
    %216 = vmatpush1.msra.mxu0 0.0
    %217 = vmatprep.subr.mxu0 0.0
    %218 = vmatpush1.msra.mxu0 0.0
    %219 = vmatprep.subr.mxu0 0.0
    %220 = vmatpush1.msra.mxu0 0.0
    %221 = vmatprep.subr.mxu0 0.0
    %222 = vmatpush1.msra.mxu0 0.0
    %223 = vmatprep.subr.mxu0 0.0
    %224 = vmatpush1.msra.mxu0 0.0
    %225 = vmatprep.subr.mxu0 0.0
    %226 = vmatpush1.msra.mxu0 0.0
    %227 = vmatprep.subr.mxu0 0.0
    %228 = vmatpush1.msra.mxu0 0.0
    %229 = vmatprep.subr.mxu0 0.0
    %230 = vmatpush1.msra.mxu0 0.0
    %231 = vmatprep.subr.mxu0 0.0
    %232 = vmatpush1.msra.mxu0 0.0
    %233 = vmatprep.subr.mxu0 0.0
    %234 = vmatpush1.msra.mxu0 0.0
    %235 = vmatprep.subr.mxu0 0.0
    %236 = vmatpush1.msra.mxu0 0.0
    %237 = vmatprep.subr.mxu0 0.0
    %238 = vmatpush1.msra.mxu0 0.0
    %239 = vmatprep.subr.mxu0 0.0
    %240 = vmatpush1.msra.mxu0 0.0
    %241 = vmatprep.subr.mxu0 0.0
    %242 = vmatpush1.msra.mxu0 0.0
    %243 = vmatprep.subr.mxu0 0.0
    %244 = vmatpush1.msra.mxu0 0.0
    %245 = vmatprep.subr.mxu0 0.0
    %246 = vmatpush1.msra.mxu0 0.0
    %247 = vmatprep.subr.mxu0 0.0
    %248 = vmatpush1.msra.mxu0 0.0
    %249 = vmatprep.subr.mxu0 0.0
    %250 = vmatpush1.msra.mxu0 0.0
    %251 = vmatprep.subr.mxu0 0.0
    %252 = vmatpush1.msra.mxu0 0.0
    %253 = vmatprep.subr.mxu0 0.0
    %254 = vmatpush1.msra.mxu0 0.0
    %255 = vmatprep.subr.mxu0 0.0
    %256 = vmatpush1.msra.mxu0 0.0
    %257 = vmatprep.subr.mxu0 0.0
    %258 = vmatpush1.msra.mxu0 0.0
    %259 = vmatprep.subr.mxu0 0.0
    %260 = vmatpush1.msra.mxu0 0.0
    %261 = vmatprep.subr.mxu0 0.0
    %262 = vmatpush1.msra.mxu0 0.0
    %263 = vmatprep.subr.mxu0 0.0
    %264 = vmatpush1.msra.mxu0 0.0
    %265 = vmatprep.subr.mxu0 0.0
    %266 = vmatpush1.msra.mxu0 0.0
    %267 = vmatprep.mubr.f32.mxu0 0.0
    %268 = vmatmul.mubr.f32.gmra.mrb[0].mxu0 %v201
    %v269 = vpop.f32.mrb[0].mxu0
    %v270 = vadd.f32 0.0, %v269
    %v271 = vpop.f32.mrb[0].mxu0
    %272 = vdwg.mxu0
    %v273 = vadd.f32 %v191, %v270
    %v274 = vxor.u32 %v273, 2147483648
    %v275 = vmul.f32 %v274, 1.442695
    %v276 = vpow.pop %v275
    %v277 = vadd.f32 %v276, 1.0
    %v278 = vrcp.pop %v277
    %v279 = vmul.f32 1.0, %v278
    %v280 = vtanh.pop %v273
    %v281 = vmul.f32 %v279, 0.0
    %283 = vrot.lane.b32.xlu0 %v280, 64
    %v284 = vpop.permute.xlu0 %283
    %v286 = vmul.f32 %v279, %v284
    %288 = vrot.lane.b32.xlu0 %v286, 32
    %v289 = vpop.permute.xlu0 %288
    %v291 = vadd.f32 %v281, %v289
    %v292 = vtanh.pop %v291
    %294 = vrot.lane.b32.xlu0 %v292, 64
    %v295 = vpop.permute.xlu0 %294
    %v297 = vmul.f32 %v279, %v295
    %299 = vrot.lane.b32.xlu0 %v297, 32
    %v300 = vpop.permute.xlu0 %299
    %vm302 = vcmask 254976
    %303 = vst.msk [vmem:[#allocation2] sm:$0x3] %vm302, %v300
    %v304 = vsel %vm199, %v300, 0
    %306 = vmatprep.subr.mxu0 0.0
    %307 = vmatpush1.msra.mxu0 %v106
    %308 = vmatprep.subr.mxu0 0.0
    %309 = vmatpush1.msra.mxu0 %v107
    %310 = vmatprep.subr.mxu0 0.0
    %311 = vmatpush1.msra.mxu0 %v108
    %312 = vmatprep.subr.mxu0 0.0
    %313 = vmatpush1.msra.mxu0 %v109
    %314 = vmatprep.subr.mxu0 0.0
    %315 = vmatpush1.msra.mxu0 0.0
    %316 = vmatprep.subr.mxu0 0.0
    %317 = vmatpush1.msra.mxu0 0.0
    %318 = vmatprep.subr.mxu0 0.0
    %319 = vmatpush1.msra.mxu0 0.0
    %320 = vmatprep.subr.mxu0 0.0
    %321 = vmatpush1.msra.mxu0 0.0
    %322 = vmatprep.subr.mxu0 0.0
    %323 = vmatpush1.msra.mxu0 0.0
    %324 = vmatprep.subr.mxu0 0.0
    %325 = vmatpush1.msra.mxu0 0.0
    %326 = vmatprep.subr.mxu0 0.0
    %327 = vmatpush1.msra.mxu0 0.0
    %328 = vmatprep.subr.mxu0 0.0
    %329 = vmatpush1.msra.mxu0 0.0
    %330 = vmatprep.subr.mxu0 0.0
    %331 = vmatpush1.msra.mxu0 0.0
    %332 = vmatprep.subr.mxu0 0.0
    %333 = vmatpush1.msra.mxu0 0.0
    %334 = vmatprep.subr.mxu0 0.0
    %335 = vmatpush1.msra.mxu0 0.0
    %336 = vmatprep.subr.mxu0 0.0
    %337 = vmatpush1.msra.mxu0 0.0
    %338 = vmatprep.subr.mxu0 0.0
    %339 = vmatpush1.msra.mxu0 0.0
    %340 = vmatprep.subr.mxu0 0.0
    %341 = vmatpush1.msra.mxu0 0.0
    %342 = vmatprep.subr.mxu0 0.0
    %343 = vmatpush1.msra.mxu0 0.0
    %344 = vmatprep.subr.mxu0 0.0
    %345 = vmatpush1.msra.mxu0 0.0
    %346 = vmatprep.subr.mxu0 0.0
    %347 = vmatpush1.msra.mxu0 0.0
    %348 = vmatprep.subr.mxu0 0.0
    %349 = vmatpush1.msra.mxu0 0.0
    %350 = vmatprep.subr.mxu0 0.0
    %351 = vmatpush1.msra.mxu0 0.0
    %352 = vmatprep.subr.mxu0 0.0
    %353 = vmatpush1.msra.mxu0 0.0
    %354 = vmatprep.subr.mxu0 0.0
    %355 = vmatpush1.msra.mxu0 0.0
    %356 = vmatprep.subr.mxu0 0.0
    %357 = vmatpush1.msra.mxu0 0.0
    %358 = vmatprep.subr.mxu0 0.0
    %359 = vmatpush1.msra.mxu0 0.0
    %360 = vmatprep.subr.mxu0 0.0
    %361 = vmatpush1.msra.mxu0 0.0
    %362 = vmatprep.subr.mxu0 0.0
    %363 = vmatpush1.msra.mxu0 0.0
    %364 = vmatprep.subr.mxu0 0.0
    %365 = vmatpush1.msra.mxu0 0.0
    %366 = vmatprep.subr.mxu0 0.0
    %367 = vmatpush1.msra.mxu0 0.0
    %368 = vmatprep.subr.mxu0 0.0
    %369 = vmatpush1.msra.mxu0 0.0
    %370 = vmatprep.mubr.f32.mxu0 0.0
    %371 = vmatmul.mubr.f32.gmra.mrb[0].mxu0 %v304
    %v372 = vpop.f32.mrb[0].mxu0
    %v373 = vadd.f32 0.0, %v372
    %v374 = vpop.f32.mrb[0].mxu0
    %375 = vdwg.mxu0
    %v377 = vrot.slane %v373, 6
    %v379 = vadd.f32 %v191, %v377
    %v380 = vxor.u32 %v379, 2147483648
    %v381 = vmul.f32 %v380, 1.442695
    %v382 = vpow.pop %v381
    %v383 = vadd.f32 %v382, 1.0
    %v384 = vrcp.pop %v383
    %v385 = vmul.f32 1.0, %v384
    %v386 = vtanh.pop %v379
    %v388 = vrot.slane %v291, 6
    %v390 = vmul.f32 %v385, %v388
    %392 = vrot.lane.b32.xlu0 %v386, 64
    %v393 = vpop.permute.xlu0 %392
    %v395 = vmul.f32 %v385, %v393
    %397 = vrot.lane.b32.xlu0 %v395, 32
    %v398 = vpop.permute.xlu0 %397
    %v400 = vadd.f32 %v390, %v398
    %v401 = vtanh.pop %v400
    %403 = vrot.lane.b32.xlu0 %v401, 64
    %v404 = vpop.permute.xlu0 %403
    %v406 = vmul.f32 %v385, %v404
    %408 = vrot.lane.b32.xlu0 %v406, 32
    %v409 = vpop.permute.xlu0 %408
    %vm411 = vcmask 257026
    %412 = vst.msk [vmem:[#allocation2] sm:$0xc] %vm411, %v409
    %v413 = vrot.slane %v406, 2
    %414 = vrot.lane.b32.xlu0 %v413, 32
    %v415 = vpop.permute.xlu0 %414
    %v416 = vsel %vm199, %v415, 0
    %418 = vmatprep.subr.mxu0 0.0
    %419 = vmatpush1.msra.mxu0 %v106
    %420 = vmatprep.subr.mxu0 0.0
    %421 = vmatpush1.msra.mxu0 %v107
    %422 = vmatprep.subr.mxu0 0.0
    %423 = vmatpush1.msra.mxu0 %v108
    %424 = vmatprep.subr.mxu0 0.0
    %425 = vmatpush1.msra.mxu0 %v109
    %426 = vmatprep.subr.mxu0 0.0
    %427 = vmatpush1.msra.mxu0 0.0
    %428 = vmatprep.subr.mxu0 0.0
    %429 = vmatpush1.msra.mxu0 0.0
    %430 = vmatprep.subr.mxu0 0.0
    %431 = vmatpush1.msra.mxu0 0.0
    %432 = vmatprep.subr.mxu0 0.0
    %433 = vmatpush1.msra.mxu0 0.0
    %434 = vmatprep.subr.mxu0 0.0
    %435 = vmatpush1.msra.mxu0 0.0
    %436 = vmatprep.subr.mxu0 0.0
    %437 = vmatpush1.msra.mxu0 0.0
    %438 = vmatprep.subr.mxu0 0.0
    %439 = vmatpush1.msra.mxu0 0.0
    %440 = vmatprep.subr.mxu0 0.0
    %441 = vmatpush1.msra.mxu0 0.0
    %442 = vmatprep.subr.mxu0 0.0
    %443 = vmatpush1.msra.mxu0 0.0
    %444 = vmatprep.subr.mxu0 0.0
    %445 = vmatpush1.msra.mxu0 0.0
    %446 = vmatprep.subr.mxu0 0.0
    %447 = vmatpush1.msra.mxu0 0.0
    %448 = vmatprep.subr.mxu0 0.0
    %449 = vmatpush1.msra.mxu0 0.0
    %450 = vmatprep.subr.mxu0 0.0
    %451 = vmatpush1.msra.mxu0 0.0
    %452 = vmatprep.subr.mxu0 0.0
    %453 = vmatpush1.msra.mxu0 0.0
    %454 = vmatprep.subr.mxu0 0.0
    %455 = vmatpush1.msra.mxu0 0.0
    %456 = vmatprep.subr.mxu0 0.0
    %457 = vmatpush1.msra.mxu0 0.0
    %458 = vmatprep.subr.mxu0 0.0
    %459 = vmatpush1.msra.mxu0 0.0
    %460 = vmatprep.subr.mxu0 0.0
    %461 = vmatpush1.msra.mxu0 0.0
    %462 = vmatprep.subr.mxu0 0.0
    %463 = vmatpush1.msra.mxu0 0.0
    %464 = vmatprep.subr.mxu0 0.0
    %465 = vmatpush1.msra.mxu0 0.0
    %466 = vmatprep.subr.mxu0 0.0
    %467 = vmatpush1.msra.mxu0 0.0
    %468 = vmatprep.subr.mxu0 0.0
    %469 = vmatpush1.msra.mxu0 0.0
    %470 = vmatprep.subr.mxu0 0.0
    %471 = vmatpush1.msra.mxu0 0.0
    %472 = vmatprep.subr.mxu0 0.0
    %473 = vmatpush1.msra.mxu0 0.0
    %474 = vmatprep.subr.mxu0 0.0
    %475 = vmatpush1.msra.mxu0 0.0
    %476 = vmatprep.subr.mxu0 0.0
    %477 = vmatpush1.msra.mxu0 0.0
    %478 = vmatprep.subr.mxu0 0.0
    %479 = vmatpush1.msra.mxu0 0.0
    %480 = vmatprep.subr.mxu0 0.0
    %481 = vmatpush1.msra.mxu0 0.0
    %482 = vmatprep.mubr.f32.mxu0 0.0
    %483 = vmatmul.mubr.f32.gmra.mrb[0].mxu0 %v416
    %v484 = vpop.f32.mrb[0].mxu0
    %v485 = vadd.f32 0.0, %v484
    %v486 = vpop.f32.mrb[0].mxu0
    %487 = vdwg.mxu0
    %v489 = vrot.slane %v485, 4
    %v491 = vadd.f32 %v191, %v489
    %v492 = vxor.u32 %v491, 2147483648
    %v493 = vmul.f32 %v492, 1.442695
    %v494 = vpow.pop %v493
    %v495 = vadd.f32 %v494, 1.0
    %v496 = vrcp.pop %v495
    %v497 = vmul.f32 1.0, %v496
    %v498 = vtanh.pop %v491
    %v500 = vrot.slane %v400, 6
    %v502 = vmul.f32 %v497, %v500
    %504 = vrot.lane.b32.xlu0 %v498, 64
    %v505 = vpop.permute.xlu0 %504
    %v507 = vmul.f32 %v497, %v505
    %509 = vrot.lane.b32.xlu0 %v507, 32
    %v510 = vpop.permute.xlu0 %509
    %v512 = vadd.f32 %v502, %v510
    %v513 = vtanh.pop %v512
    %515 = vrot.lane.b32.xlu0 %v513, 64
    %v516 = vpop.permute.xlu0 %515
    %v518 = vmul.f32 %v497, %v516
    %520 = vrot.lane.b32.xlu0 %v518, 32
    %v521 = vpop.permute.xlu0 %520
    %vm523 = vcmask 259076
    %524 = vst.msk [vmem:[#allocation2] sm:$0x30] %vm523, %v521
    %v525 = vrot.slane %v518, 4
    %526 = vrot.lane.b32.xlu0 %v525, 32
    %v527 = vpop.permute.xlu0 %526
    %v528 = vsel %vm199, %v527, 0
    %530 = vmatprep.subr.mxu0 0.0
    %531 = vmatpush1.msra.mxu0 %v106
    %532 = vmatprep.subr.mxu0 0.0
    %533 = vmatpush1.msra.mxu0 %v107
    %534 = vmatprep.subr.mxu0 0.0
    %535 = vmatpush1.msra.mxu0 %v108
    %536 = vmatprep.subr.mxu0 0.0
    %537 = vmatpush1.msra.mxu0 %v109
    %538 = vmatprep.subr.mxu0 0.0
    %539 = vmatpush1.msra.mxu0 0.0
    %540 = vmatprep.subr.mxu0 0.0
    %541 = vmatpush1.msra.mxu0 0.0
    %542 = vmatprep.subr.mxu0 0.0
    %543 = vmatpush1.msra.mxu0 0.0
    %544 = vmatprep.subr.mxu0 0.0
    %545 = vmatpush1.msra.mxu0 0.0
    %546 = vmatprep.subr.mxu0 0.0
    %547 = vmatpush1.msra.mxu0 0.0
    %548 = vmatprep.subr.mxu0 0.0
    %549 = vmatpush1.msra.mxu0 0.0
    %550 = vmatprep.subr.mxu0 0.0
    %551 = vmatpush1.msra.mxu0 0.0
    %552 = vmatprep.subr.mxu0 0.0
    %553 = vmatpush1.msra.mxu0 0.0
    %554 = vmatprep.subr.mxu0 0.0
    %555 = vmatpush1.msra.mxu0 0.0
    %556 = vmatprep.subr.mxu0 0.0
    %557 = vmatpush1.msra.mxu0 0.0
    %558 = vmatprep.subr.mxu0 0.0
    %559 = vmatpush1.msra.mxu0 0.0
    %560 = vmatprep.subr.mxu0 0.0
    %561 = vmatpush1.msra.mxu0 0.0
    %562 = vmatprep.subr.mxu0 0.0
    %563 = vmatpush1.msra.mxu0 0.0
    %564 = vmatprep.subr.mxu0 0.0
    %565 = vmatpush1.msra.mxu0 0.0
    %566 = vmatprep.subr.mxu0 0.0
    %567 = vmatpush1.msra.mxu0 0.0
    %568 = vmatprep.subr.mxu0 0.0
    %569 = vmatpush1.msra.mxu0 0.0
    %570 = vmatprep.subr.mxu0 0.0
    %571 = vmatpush1.msra.mxu0 0.0
    %572 = vmatprep.subr.mxu0 0.0
    %573 = vmatpush1.msra.mxu0 0.0
    %574 = vmatprep.subr.mxu0 0.0
    %575 = vmatpush1.msra.mxu0 0.0
    %576 = vmatprep.subr.mxu0 0.0
    %577 = vmatpush1.msra.mxu0 0.0
    %578 = vmatprep.subr.mxu0 0.0
    %579 = vmatpush1.msra.mxu0 0.0
    %580 = vmatprep.subr.mxu0 0.0
    %581 = vmatpush1.msra.mxu0 0.0
    %582 = vmatprep.subr.mxu0 0.0
    %583 = vmatpush1.msra.mxu0 0.0
    %584 = vmatprep.subr.mxu0 0.0
    %585 = vmatpush1.msra.mxu0 0.0
    %586 = vmatprep.subr.mxu0 0.0
    %587 = vmatpush1.msra.mxu0 0.0
    %588 = vmatprep.subr.mxu0 0.0
    %589 = vmatpush1.msra.mxu0 0.0
    %590 = vmatprep.subr.mxu0 0.0
    %591 = vmatpush1.msra.mxu0 0.0
    %592 = vmatprep.subr.mxu0 0.0
    %593 = vmatpush1.msra.mxu0 0.0
    %594 = vmatprep.mubr.f32.mxu0 0.0
    %595 = vmatmul.mubr.f32.gmra.mrb[0].mxu0 %v528
    %v596 = vpop.f32.mrb[0].mxu0
    %v597 = vadd.f32 0.0, %v596
    %v598 = vpop.f32.mrb[0].mxu0
    %599 = vdwg.mxu0
    %v601 = vrot.slane %v597, 2
    %v603 = vadd.f32 %v191, %v601
    %v604 = vxor.u32 %v603, 2147483648
    %v605 = vmul.f32 %v604, 1.442695
    %v606 = vpow.pop %v605
    %v607 = vadd.f32 %v606, 1.0
    %v608 = vrcp.pop %v607
    %v609 = vmul.f32 1.0, %v608
    %v610 = vtanh.pop %v603
    %v612 = vrot.slane %v512, 6
    %v614 = vmul.f32 %v609, %v612
    %616 = vrot.lane.b32.xlu0 %v610, 64
    %v617 = vpop.permute.xlu0 %616
    %v619 = vmul.f32 %v609, %v617
    %621 = vrot.lane.b32.xlu0 %v619, 32
    %v622 = vpop.permute.xlu0 %621
    %v624 = vadd.f32 %v614, %v622
    %v625 = vtanh.pop %v624
    %627 = vrot.lane.b32.xlu0 %v625, 64
    %v628 = vpop.permute.xlu0 %627
    %v630 = vmul.f32 %v609, %v628
    %632 = vrot.lane.b32.xlu0 %v630, 32
    %v633 = vpop.permute.xlu0 %632
    %vm635 = vcmask 261126
    %636 = vst.msk [vmem:[#allocation2] sm:$0xc0] %vm635, %v633
    %v637 = vrot.slane %v630, 6
    %638 = vrot.lane.b32.xlu0 %v637, 32
    %v639 = vpop.permute.xlu0 %638
    %v640 = vsel %vm199, %v639, 0
    %642 = vmatprep.subr.mxu0 0.0
    %643 = vmatpush1.msra.mxu0 %v106
    %644 = vmatprep.subr.mxu0 0.0
    %645 = vmatpush1.msra.mxu0 %v107
    %646 = vmatprep.subr.mxu0 0.0
    %647 = vmatpush1.msra.mxu0 %v108
    %648 = vmatprep.subr.mxu0 0.0
    %649 = vmatpush1.msra.mxu0 %v109
    %650 = vmatprep.subr.mxu0 0.0
    %651 = vmatpush1.msra.mxu0 0.0
    %652 = vmatprep.subr.mxu0 0.0
    %653 = vmatpush1.msra.mxu0 0.0
    %654 = vmatprep.subr.mxu0 0.0
    %655 = vmatpush1.msra.mxu0 0.0
    %656 = vmatprep.subr.mxu0 0.0
    %657 = vmatpush1.msra.mxu0 0.0
    %658 = vmatprep.subr.mxu0 0.0
    %659 = vmatpush1.msra.mxu0 0.0
    %660 = vmatprep.subr.mxu0 0.0
    %661 = vmatpush1.msra.mxu0 0.0
    %662 = vmatprep.subr.mxu0 0.0
    %663 = vmatpush1.msra.mxu0 0.0
    %664 = vmatprep.subr.mxu0 0.0
    %665 = vmatpush1.msra.mxu0 0.0
    %666 = vmatprep.subr.mxu0 0.0
    %667 = vmatpush1.msra.mxu0 0.0
    %668 = vmatprep.subr.mxu0 0.0
    %669 = vmatpush1.msra.mxu0 0.0
    %670 = vmatprep.subr.mxu0 0.0
    %671 = vmatpush1.msra.mxu0 0.0
    %672 = vmatprep.subr.mxu0 0.0
    %673 = vmatpush1.msra.mxu0 0.0
    %674 = vmatprep.subr.mxu0 0.0
    %675 = vmatpush1.msra.mxu0 0.0
    %676 = vmatprep.subr.mxu0 0.0
    %677 = vmatpush1.msra.mxu0 0.0
    %678 = vmatprep.subr.mxu0 0.0
    %679 = vmatpush1.msra.mxu0 0.0
    %680 = vmatprep.subr.mxu0 0.0
    %681 = vmatpush1.msra.mxu0 0.0
    %682 = vmatprep.subr.mxu0 0.0
    %683 = vmatpush1.msra.mxu0 0.0
    %684 = vmatprep.subr.mxu0 0.0
    %685 = vmatpush1.msra.mxu0 0.0
    %686 = vmatprep.subr.mxu0 0.0
    %687 = vmatpush1.msra.mxu0 0.0
    %688 = vmatprep.subr.mxu0 0.0
    %689 = vmatpush1.msra.mxu0 0.0
    %690 = vmatprep.subr.mxu0 0.0
    %691 = vmatpush1.msra.mxu0 0.0
    %692 = vmatprep.subr.mxu0 0.0
    %693 = vmatpush1.msra.mxu0 0.0
    %694 = vmatprep.subr.mxu0 0.0
    %695 = vmatpush1.msra.mxu0 0.0
    %696 = vmatprep.subr.mxu0 0.0
    %697 = vmatpush1.msra.mxu0 0.0
    %698 = vmatprep.subr.mxu0 0.0
    %699 = vmatpush1.msra.mxu0 0.0
    %700 = vmatprep.subr.mxu0 0.0
    %701 = vmatpush1.msra.mxu0 0.0
    %702 = vmatprep.subr.mxu0 0.0
    %703 = vmatpush1.msra.mxu0 0.0
    %704 = vmatprep.subr.mxu0 0.0
    %705 = vmatpush1.msra.mxu0 0.0
    %706 = vmatprep.mubr.f32.mxu0 0.0
    %707 = vmatmul.mubr.f32.gmra.mrb[0].mxu0 %v640
    %v708 = vpop.f32.mrb[0].mxu0
    %v709 = vadd.f32 0.0, %v708
    %v710 = vpop.f32.mrb[0].mxu0
    %711 = vdwg.mxu0
    %v712 = vadd.f32 %v196, %v709
    %v713 = vxor.u32 %v712, 2147483648
    %v714 = vmul.f32 %v713, 1.442695
    %v715 = vpow.pop %v714
    %v716 = vadd.f32 %v715, 1.0
    %v717 = vrcp.pop %v716
    %v718 = vmul.f32 1.0, %v717
    %v719 = vtanh.pop %v712
    %v721 = vrot.slane %v624, 6
    %v723 = vmul.f32 %v718, %v721
    %725 = vrot.lane.b32.xlu0 %v719, 64
    %v726 = vpop.permute.xlu0 %725
    %v728 = vmul.f32 %v718, %v726
    %730 = vrot.lane.b32.xlu0 %v728, 32
    %v731 = vpop.permute.xlu0 %730
    %v733 = vadd.f32 %v723, %v731
    %v734 = vtanh.pop %v733
    %736 = vrot.lane.b32.xlu0 %v734, 64
    %v737 = vpop.permute.xlu0 %736
    %v739 = vmul.f32 %v718, %v737
    %741 = vrot.lane.b32.xlu0 %v739, 32
    %v742 = vpop.permute.xlu0 %741
    %744 = vst.msk [vmem:[#allocation2 + $0x8] sm:$0x3] %vm302, %v742
    %v745 = vsel %vm199, %v742, 0
    %747 = vmatprep.subr.mxu0 0.0
    %748 = vmatpush1.msra.mxu0 %v106
    %749 = vmatprep.subr.mxu0 0.0
    %750 = vmatpush1.msra.mxu0 %v107
    %751 = vmatprep.subr.mxu0 0.0
    %752 = vmatpush1.msra.mxu0 %v108
    %753 = vmatprep.subr.mxu0 0.0
    %754 = vmatpush1.msra.mxu0 %v109
    %755 = vmatprep.subr.mxu0 0.0
    %756 = vmatpush1.msra.mxu0 0.0
    %757 = vmatprep.subr.mxu0 0.0
    %758 = vmatpush1.msra.mxu0 0.0
    %759 = vmatprep.subr.mxu0 0.0
    %760 = vmatpush1.msra.mxu0 0.0
    %761 = vmatprep.subr.mxu0 0.0
    %762 = vmatpush1.msra.mxu0 0.0
    %763 = vmatprep.subr.mxu0 0.0
    %764 = vmatpush1.msra.mxu0 0.0
    %765 = vmatprep.subr.mxu0 0.0
    %766 = vmatpush1.msra.mxu0 0.0
    %767 = vmatprep.subr.mxu0 0.0
    %768 = vmatpush1.msra.mxu0 0.0
    %769 = vmatprep.subr.mxu0 0.0
    %770 = vmatpush1.msra.mxu0 0.0
    %771 = vmatprep.subr.mxu0 0.0
    %772 = vmatpush1.msra.mxu0 0.0
    %773 = vmatprep.subr.mxu0 0.0
    %774 = vmatpush1.msra.mxu0 0.0
    %775 = vmatprep.subr.mxu0 0.0
    %776 = vmatpush1.msra.mxu0 0.0
    %777 = vmatprep.subr.mxu0 0.0
    %778 = vmatpush1.msra.mxu0 0.0
    %779 = vmatprep.subr.mxu0 0.0
    %780 = vmatpush1.msra.mxu0 0.0
    %781 = vmatprep.subr.mxu0 0.0
    %782 = vmatpush1.msra.mxu0 0.0
    %783 = vmatprep.subr.mxu0 0.0
    %784 = vmatpush1.msra.mxu0 0.0
    %785 = vmatprep.subr.mxu0 0.0
    %786 = vmatpush1.msra.mxu0 0.0
    %787 = vmatprep.subr.mxu0 0.0
    %788 = vmatpush1.msra.mxu0 0.0
    %789 = vmatprep.subr.mxu0 0.0
    %790 = vmatpush1.msra.mxu0 0.0
    %791 = vmatprep.subr.mxu0 0.0
    %792 = vmatpush1.msra.mxu0 0.0
    %793 = vmatprep.subr.mxu0 0.0
    %794 = vmatpush1.msra.mxu0 0.0
    %795 = vmatprep.subr.mxu0 0.0
    %796 = vmatpush1.msra.mxu0 0.0
    %797 = vmatprep.subr.mxu0 0.0
    %798 = vmatpush1.msra.mxu0 0.0
    %799 = vmatprep.subr.mxu0 0.0
    %800 = vmatpush1.msra.mxu0 0.0
    %801 = vmatprep.subr.mxu0 0.0
    %802 = vmatpush1.msra.mxu0 0.0
    %803 = vmatprep.subr.mxu0 0.0
    %804 = vmatpush1.msra.mxu0 0.0
    %805 = vmatprep.subr.mxu0 0.0
    %806 = vmatpush1.msra.mxu0 0.0
    %807 = vmatprep.subr.mxu0 0.0
    %808 = vmatpush1.msra.mxu0 0.0
    %809 = vmatprep.subr.mxu0 0.0
    %810 = vmatpush1.msra.mxu0 0.0
    %811 = vmatprep.mubr.f32.mxu0 0.0
    %812 = vmatmul.mubr.f32.gmra.mrb[0].mxu0 %v745
    %v813 = vpop.f32.mrb[0].mxu0
    %v814 = vadd.f32 0.0, %v813
    %v815 = vpop.f32.mrb[0].mxu0
    %816 = vdwg.mxu0
    %v818 = vrot.slane %v814, 6
    %v820 = vadd.f32 %v196, %v818
    %v821 = vxor.u32 %v820, 2147483648
    %v822 = vmul.f32 %v821, 1.442695
    %v823 = vpow.pop %v822
    %v824 = vadd.f32 %v823, 1.0
    %v825 = vrcp.pop %v824
    %v826 = vmul.f32 1.0, %v825
    %v827 = vtanh.pop %v820
    %v829 = vrot.slane %v733, 6
    %v831 = vmul.f32 %v826, %v829
    %833 = vrot.lane.b32.xlu0 %v827, 64
    %v834 = vpop.permute.xlu0 %833
    %v836 = vmul.f32 %v826, %v834
    %838 = vrot.lane.b32.xlu0 %v836, 32
    %v839 = vpop.permute.xlu0 %838
    %v841 = vadd.f32 %v831, %v839
    %v842 = vtanh.pop %v841
    %844 = vrot.lane.b32.xlu0 %v842, 64
    %v845 = vpop.permute.xlu0 %844
    %v847 = vmul.f32 %v826, %v845
    %849 = vrot.lane.b32.xlu0 %v847, 32
    %v850 = vpop.permute.xlu0 %849
    %852 = vst.msk [vmem:[#allocation2 + $0x8] sm:$0xc] %vm411, %v850
    %v853 = vrot.slane %v847, 2
    %854 = vrot.lane.b32.xlu0 %v853, 32
    %v855 = vpop.permute.xlu0 %854
    %v856 = vsel %vm199, %v855, 0
    %858 = vmatprep.subr.mxu0 0.0
    %859 = vmatpush1.msra.mxu0 %v106
    %860 = vmatprep.subr.mxu0 0.0
    %861 = vmatpush1.msra.mxu0 %v107
    %862 = vmatprep.subr.mxu0 0.0
    %863 = vmatpush1.msra.mxu0 %v108
    %864 = vmatprep.subr.mxu0 0.0
    %865 = vmatpush1.msra.mxu0 %v109
    %866 = vmatprep.subr.mxu0 0.0
    %867 = vmatpush1.msra.mxu0 0.0
    %868 = vmatprep.subr.mxu0 0.0
    %869 = vmatpush1.msra.mxu0 0.0
    %870 = vmatprep.subr.mxu0 0.0
    %871 = vmatpush1.msra.mxu0 0.0
    %872 = vmatprep.subr.mxu0 0.0
    %873 = vmatpush1.msra.mxu0 0.0
    %874 = vmatprep.subr.mxu0 0.0
    %875 = vmatpush1.msra.mxu0 0.0
    %876 = vmatprep.subr.mxu0 0.0
    %877 = vmatpush1.msra.mxu0 0.0
    %878 = vmatprep.subr.mxu0 0.0
    %879 = vmatpush1.msra.mxu0 0.0
    %880 = vmatprep.subr.mxu0 0.0
    %881 = vmatpush1.msra.mxu0 0.0
    %882 = vmatprep.subr.mxu0 0.0
    %883 = vmatpush1.msra.mxu0 0.0
    %884 = vmatprep.subr.mxu0 0.0
    %885 = vmatpush1.msra.mxu0 0.0
    %886 = vmatprep.subr.mxu0 0.0
    %887 = vmatpush1.msra.mxu0 0.0
    %888 = vmatprep.subr.mxu0 0.0
    %889 = vmatpush1.msra.mxu0 0.0
    %890 = vmatprep.subr.mxu0 0.0
    %891 = vmatpush1.msra.mxu0 0.0
    %892 = vmatprep.subr.mxu0 0.0
    %893 = vmatpush1.msra.mxu0 0.0
    %894 = vmatprep.subr.mxu0 0.0
    %895 = vmatpush1.msra.mxu0 0.0
    %896 = vmatprep.subr.mxu0 0.0
    %897 = vmatpush1.msra.mxu0 0.0
    %898 = vmatprep.subr.mxu0 0.0
    %899 = vmatpush1.msra.mxu0 0.0
    %900 = vmatprep.subr.mxu0 0.0
    %901 = vmatpush1.msra.mxu0 0.0
    %902 = vmatprep.subr.mxu0 0.0
    %903 = vmatpush1.msra.mxu0 0.0
    %904 = vmatprep.subr.mxu0 0.0
    %905 = vmatpush1.msra.mxu0 0.0
    %906 = vmatprep.subr.mxu0 0.0
    %907 = vmatpush1.msra.mxu0 0.0
    %908 = vmatprep.subr.mxu0 0.0
    %909 = vmatpush1.msra.mxu0 0.0
    %910 = vmatprep.subr.mxu0 0.0
    %911 = vmatpush1.msra.mxu0 0.0
    %912 = vmatprep.subr.mxu0 0.0
    %913 = vmatpush1.msra.mxu0 0.0
    %914 = vmatprep.subr.mxu0 0.0
    %915 = vmatpush1.msra.mxu0 0.0
    %916 = vmatprep.subr.mxu0 0.0
    %917 = vmatpush1.msra.mxu0 0.0
    %918 = vmatprep.subr.mxu0 0.0
    %919 = vmatpush1.msra.mxu0 0.0
    %920 = vmatprep.subr.mxu0 0.0
    %921 = vmatpush1.msra.mxu0 0.0
    %922 = vmatprep.mubr.f32.mxu0 0.0
    %923 = vmatmul.mubr.f32.gmra.mrb[0].mxu0 %v856
    %v924 = vpop.f32.mrb[0].mxu0
    %v925 = vadd.f32 0.0, %v924
    %v926 = vpop.f32.mrb[0].mxu0
    %927 = vdwg.mxu0
    %v929 = vrot.slane %v925, 4
    %v931 = vadd.f32 %v196, %v929
    %v932 = vxor.u32 %v931, 2147483648
    %v933 = vmul.f32 %v932, 1.442695
    %v934 = vpow.pop %v933
    %v935 = vadd.f32 %v934, 1.0
    %v936 = vrcp.pop %v935
    %v937 = vmul.f32 1.0, %v936
    %v938 = vtanh.pop %v931
    %v940 = vrot.slane %v841, 6
    %v942 = vmul.f32 %v937, %v940
    %944 = vrot.lane.b32.xlu0 %v938, 64
    %v945 = vpop.permute.xlu0 %944
    %v947 = vmul.f32 %v937, %v945
    %949 = vrot.lane.b32.xlu0 %v947, 32
    %v950 = vpop.permute.xlu0 %949
    %v952 = vadd.f32 %v942, %v950
    %v953 = vtanh.pop %v952
    %955 = vrot.lane.b32.xlu0 %v953, 64
    %v956 = vpop.permute.xlu0 %955
    %v958 = vmul.f32 %v937, %v956
    %960 = vrot.lane.b32.xlu0 %v958, 32
    %v961 = vpop.permute.xlu0 %960
    %963 = vst.msk [vmem:[#allocation2 + $0x8] sm:$0x30] %vm523, %v961
    %v964 = vrot.slane %v958, 4
    %965 = vrot.lane.b32.xlu0 %v964, 32
    %v966 = vpop.permute.xlu0 %965
    %v967 = vsel %vm199, %v966, 0
    %969 = vmatprep.subr.mxu0 0.0
    %970 = vmatpush1.msra.mxu0 %v106
    %971 = vmatprep.subr.mxu0 0.0
    %972 = vmatpush1.msra.mxu0 %v107
    %973 = vmatprep.subr.mxu0 0.0
    %974 = vmatpush1.msra.mxu0 %v108
    %975 = vmatprep.subr.mxu0 0.0
    %976 = vmatpush1.msra.mxu0 %v109
    %977 = vmatprep.subr.mxu0 0.0
    %978 = vmatpush1.msra.mxu0 0.0
    %979 = vmatprep.subr.mxu0 0.0
    %980 = vmatpush1.msra.mxu0 0.0
    %981 = vmatprep.subr.mxu0 0.0
    %982 = vmatpush1.msra.mxu0 0.0
    %983 = vmatprep.subr.mxu0 0.0
    %984 = vmatpush1.msra.mxu0 0.0
    %985 = vmatprep.subr.mxu0 0.0
    %986 = vmatpush1.msra.mxu0 0.0
    %987 = vmatprep.subr.mxu0 0.0
    %988 = vmatpush1.msra.mxu0 0.0
    %989 = vmatprep.subr.mxu0 0.0
    %990 = vmatpush1.msra.mxu0 0.0
    %991 = vmatprep.subr.mxu0 0.0
    %992 = vmatpush1.msra.mxu0 0.0
    %993 = vmatprep.subr.mxu0 0.0
    %994 = vmatpush1.msra.mxu0 0.0
    %995 = vmatprep.subr.mxu0 0.0
    %996 = vmatpush1.msra.mxu0 0.0
    %997 = vmatprep.subr.mxu0 0.0
    %998 = vmatpush1.msra.mxu0 0.0
    %999 = vmatprep.subr.mxu0 0.0
    %1000 = vmatpush1.msra.mxu0 0.0
    %1001 = vmatprep.subr.mxu0 0.0
    %1002 = vmatpush1.msra.mxu0 0.0
    %1003 = vmatprep.subr.mxu0 0.0
    %1004 = vmatpush1.msra.mxu0 0.0
    %1005 = vmatprep.subr.mxu0 0.0
    %1006 = vmatpush1.msra.mxu0 0.0
    %1007 = vmatprep.subr.mxu0 0.0
    %1008 = vmatpush1.msra.mxu0 0.0
    %1009 = vmatprep.subr.mxu0 0.0
    %1010 = vmatpush1.msra.mxu0 0.0
    %1011 = vmatprep.subr.mxu0 0.0
    %1012 = vmatpush1.msra.mxu0 0.0
    %1013 = vmatprep.subr.mxu0 0.0
    %1014 = vmatpush1.msra.mxu0 0.0
    %1015 = vmatprep.subr.mxu0 0.0
    %1016 = vmatpush1.msra.mxu0 0.0
    %1017 = vmatprep.subr.mxu0 0.0
    %1018 = vmatpush1.msra.mxu0 0.0
    %1019 = vmatprep.subr.mxu0 0.0
    %1020 = vmatpush1.msra.mxu0 0.0
    %1021 = vmatprep.subr.mxu0 0.0
    %1022 = vmatpush1.msra.mxu0 0.0
    %1023 = vmatprep.subr.mxu0 0.0
    %1024 = vmatpush1.msra.mxu0 0.0
    %1025 = vmatprep.subr.mxu0 0.0
    %1026 = vmatpush1.msra.mxu0 0.0
    %1027 = vmatprep.subr.mxu0 0.0
    %1028 = vmatpush1.msra.mxu0 0.0
    %1029 = vmatprep.subr.mxu0 0.0
    %1030 = vmatpush1.msra.mxu0 0.0
    %1031 = vmatprep.subr.mxu0 0.0
    %1032 = vmatpush1.msra.mxu0 0.0
    %1033 = vmatprep.mubr.f32.mxu0 0.0
    %1034 = vmatmul.mubr.f32.gmra.mrb[0].mxu0 %v967
    %v1035 = vpop.f32.mrb[0].mxu0
    %v1036 = vadd.f32 0.0, %v1035
    %v1037 = vpop.f32.mrb[0].mxu0
    %1038 = vdwg.mxu0
    %v1040 = vrot.slane %v1036, 2
    %v1042 = vadd.f32 %v196, %v1040
    %v1043 = vxor.u32 %v1042, 2147483648
    %v1044 = vmul.f32 %v1043, 1.442695
    %v1045 = vpow.pop %v1044
    %v1046 = vadd.f32 %v1045, 1.0
    %v1047 = vrcp.pop %v1046
    %v1048 = vmul.f32 1.0, %v1047
    %v1049 = vtanh.pop %v1042
    %v1051 = vrot.slane %v952, 6
    %v1053 = vmul.f32 %v1048, %v1051
    %1055 = vrot.lane.b32.xlu0 %v1049, 64
    %v1056 = vpop.permute.xlu0 %1055
    %v1058 = vmul.f32 %v1048, %v1056
    %1060 = vrot.lane.b32.xlu0 %v1058, 32
    %v1061 = vpop.permute.xlu0 %1060
    %v1063 = vadd.f32 %v1053, %v1061
    %v1064 = vtanh.pop %v1063
    %1066 = vrot.lane.b32.xlu0 %v1064, 64
    %v1067 = vpop.permute.xlu0 %1066
    %v1069 = vmul.f32 %v1048, %v1067
    %1071 = vrot.lane.b32.xlu0 %v1069, 32
    %v1072 = vpop.permute.xlu0 %1071
    %1074 = vst.msk [vmem:[#allocation2 + $0x8] sm:$0xc0] %vm635, %v1072
    %v1075 = vld [vmem:[#allocation2] sm:$0xff]
    %v1076 = vld [vmem:[#allocation2 + $0x8] sm:$0xff]
    %v1077 = vld [vmem:[#allocation9] sm:$0xff]
    %v1078 = vld [vmem:[#allocation9 + $0x8] sm:$0xff]
    %v1079 = vld [vmem:[#allocation9 + $0x10] sm:$0xff]
    %v1080 = vld [vmem:[#allocation9 + $0x18] sm:$0xff]
    %v1081 = vld [vmem:[#allocation11] sm:$0xff]
    %v1082 = vld [vmem:[#allocation11 + $0x8] sm:$0xff]
    %v1083 = vld [vmem:[#allocation11 + $0x10] sm:$0xff]
    %v1084 = vld [vmem:[#allocation11 + $0x18] sm:$0xff]
    %v1085 = vld [vmem:[%s6] sm:$0x1]
    %v1087 = vlaneseq
    %v1088 = vshrl.u32 %v1087, 7
    %v1089 = vsub.s32 0, %v1088
    %v1090 = vrot.slane %v1085, %v1089
    %v1093 = vsel %vm199, %v1075, 0
    %v1096 = vsel %vm199, %v1076, 0
    %1098 = vmatprep.subr.mxu0 0.0
    %1099 = vmatpush1.msra.mxu0 %v1077
    %1100 = vmatprep.subr.mxu0 0.0
    %1101 = vmatpush1.msra.mxu0 %v1078
    %1102 = vmatprep.subr.mxu0 0.0
    %1103 = vmatpush1.msra.mxu0 %v1079
    %1104 = vmatprep.subr.mxu0 0.0
    %1105 = vmatpush1.msra.mxu0 %v1080
    %1106 = vmatprep.subr.mxu0 0.0
    %1107 = vmatpush1.msra.mxu0 0.0
    %1108 = vmatprep.subr.mxu0 0.0
    %1109 = vmatpush1.msra.mxu0 0.0
    %1110 = vmatprep.subr.mxu0 0.0
    %1111 = vmatpush1.msra.mxu0 0.0
    %1112 = vmatprep.subr.mxu0 0.0
    %1113 = vmatpush1.msra.mxu0 0.0
    %1114 = vmatprep.subr.mxu0 0.0
    %1115 = vmatpush1.msra.mxu0 0.0
    %1116 = vmatprep.subr.mxu0 0.0
    %1117 = vmatpush1.msra.mxu0 0.0
    %1118 = vmatprep.subr.mxu0 0.0
    %1119 = vmatpush1.msra.mxu0 0.0
    %1120 = vmatprep.subr.mxu0 0.0
    %1121 = vmatpush1.msra.mxu0 0.0
    %1122 = vmatprep.subr.mxu0 0.0
    %1123 = vmatpush1.msra.mxu0 0.0
    %1124 = vmatprep.subr.mxu0 0.0
    %1125 = vmatpush1.msra.mxu0 0.0
    %1126 = vmatprep.subr.mxu0 0.0
    %1127 = vmatpush1.msra.mxu0 0.0
    %1128 = vmatprep.subr.mxu0 0.0
    %1129 = vmatpush1.msra.mxu0 0.0
    %1130 = vmatprep.subr.mxu0 0.0
    %1131 = vmatpush1.msra.mxu0 0.0
    %1132 = vmatprep.subr.mxu0 0.0
    %1133 = vmatpush1.msra.mxu0 0.0
    %1134 = vmatprep.subr.mxu0 0.0
    %1135 = vmatpush1.msra.mxu0 0.0
    %1136 = vmatprep.subr.mxu0 0.0
    %1137 = vmatpush1.msra.mxu0 0.0
    %1138 = vmatprep.subr.mxu0 0.0
    %1139 = vmatpush1.msra.mxu0 0.0
    %1140 = vmatprep.subr.mxu0 0.0
    %1141 = vmatpush1.msra.mxu0 0.0
    %1142 = vmatprep.subr.mxu0 0.0
    %1143 = vmatpush1.msra.mxu0 0.0
    %1144 = vmatprep.subr.mxu0 0.0
    %1145 = vmatpush1.msra.mxu0 0.0
    %1146 = vmatprep.subr.mxu0 0.0
    %1147 = vmatpush1.msra.mxu0 0.0
    %1148 = vmatprep.subr.mxu0 0.0
    %1149 = vmatpush1.msra.mxu0 0.0
    %1150 = vmatprep.subr.mxu0 0.0
    %1151 = vmatpush1.msra.mxu0 0.0
    %1152 = vmatprep.subr.mxu0 0.0
    %1153 = vmatpush1.msra.mxu0 0.0
    %1154 = vmatprep.subr.mxu0 0.0
    %1155 = vmatpush1.msra.mxu0 0.0
    %1156 = vmatprep.subr.mxu0 0.0
    %1157 = vmatpush1.msra.mxu0 0.0
    %1158 = vmatprep.subr.mxu0 0.0
    %1159 = vmatpush1.msra.mxu0 0.0
    %1160 = vmatprep.subr.mxu0 0.0
    %1161 = vmatpush1.msra.mxu0 0.0
    %1162 = vmatprep.mubr.f32.mxu0 0.0
    %1163 = vmatmul.mubr.f32.gmra.mrb[0].mxu0 %v1093
    %v1164 = vpop.f32.mrb[0].mxu0
    %v1165 = vadd.f32 %v1090, %v1164
    %v1166 = vpop.f32.mrb[0].mxu0
    %1167 = vmatprep.mubr.f32.mxu0 0.0
    %1168 = vmatmul.mubr.f32.gmra.mrb[0].mxu0 %v1096
    %v1169 = vpop.f32.mrb[0].mxu0
    %v1170 = vadd.f32 %v1090, %v1169
    %v1171 = vpop.f32.mrb[0].mxu0
    %1172 = vdwg.mxu0
    %1173 = vmatprep.subr.mxu0 0.0
    %1174 = vmatpush1.msra.mxu0 %v1081
    %1175 = vmatprep.subr.mxu0 0.0
    %1176 = vmatpush1.msra.mxu0 %v1082
    %1177 = vmatprep.subr.mxu0 0.0
    %1178 = vmatpush1.msra.mxu0 %v1083
    %1179 = vmatprep.subr.mxu0 0.0
    %1180 = vmatpush1.msra.mxu0 %v1084
    %1181 = vmatprep.subr.mxu0 0.0
    %1182 = vmatpush1.msra.mxu0 0.0
    %1183 = vmatprep.subr.mxu0 0.0
    %1184 = vmatpush1.msra.mxu0 0.0
    %1185 = vmatprep.subr.mxu0 0.0
    %1186 = vmatpush1.msra.mxu0 0.0
    %1187 = vmatprep.subr.mxu0 0.0
    %1188 = vmatpush1.msra.mxu0 0.0
    %1189 = vmatprep.subr.mxu0 0.0
    %1190 = vmatpush1.msra.mxu0 0.0
    %1191 = vmatprep.subr.mxu0 0.0
    %1192 = vmatpush1.msra.mxu0 0.0
    %1193 = vmatprep.subr.mxu0 0.0
    %1194 = vmatpush1.msra.mxu0 0.0
    %1195 = vmatprep.subr.mxu0 0.0
    %1196 = vmatpush1.msra.mxu0 0.0
    %1197 = vmatprep.subr.mxu0 0.0
    %1198 = vmatpush1.msra.mxu0 0.0
    %1199 = vmatprep.subr.mxu0 0.0
    %1200 = vmatpush1.msra.mxu0 0.0
    %1201 = vmatprep.subr.mxu0 0.0
    %1202 = vmatpush1.msra.mxu0 0.0
    %1203 = vmatprep.subr.mxu0 0.0
    %1204 = vmatpush1.msra.mxu0 0.0
    %1205 = vmatprep.subr.mxu0 0.0
    %1206 = vmatpush1.msra.mxu0 0.0
    %1207 = vmatprep.subr.mxu0 0.0
    %1208 = vmatpush1.msra.mxu0 0.0
    %1209 = vmatprep.subr.mxu0 0.0
    %1210 = vmatpush1.msra.mxu0 0.0
    %1211 = vmatprep.subr.mxu0 0.0
    %1212 = vmatpush1.msra.mxu0 0.0
    %1213 = vmatprep.subr.mxu0 0.0
    %1214 = vmatpush1.msra.mxu0 0.0
    %1215 = vmatprep.subr.mxu0 0.0
    %1216 = vmatpush1.msra.mxu0 0.0
    %1217 = vmatprep.subr.mxu0 0.0
    %1218 = vmatpush1.msra.mxu0 0.0
    %1219 = vmatprep.subr.mxu0 0.0
    %1220 = vmatpush1.msra.mxu0 0.0
    %1221 = vmatprep.subr.mxu0 0.0
    %1222 = vmatpush1.msra.mxu0 0.0
    %1223 = vmatprep.subr.mxu0 0.0
    %1224 = vmatpush1.msra.mxu0 0.0
    %1225 = vmatprep.subr.mxu0 0.0
    %1226 = vmatpush1.msra.mxu0 0.0
    %1227 = vmatprep.subr.mxu0 0.0
    %1228 = vmatpush1.msra.mxu0 0.0
    %1229 = vmatprep.subr.mxu0 0.0
    %1230 = vmatpush1.msra.mxu0 0.0
    %1231 = vmatprep.subr.mxu0 0.0
    %1232 = vmatpush1.msra.mxu0 0.0
    %1233 = vmatprep.subr.mxu0 0.0
    %1234 = vmatpush1.msra.mxu0 0.0
    %1235 = vmatprep.subr.mxu0 0.0
    %1236 = vmatpush1.msra.mxu0 0.0
    %1237 = vmatprep.mubr.f32.mxu0 0.0
    %1238 = vmatmul.mubr.f32.gmra.mrb[0].mxu0 %v201
    %v1239 = vpop.f32.mrb[0].mxu0
    %v1240 = vadd.f32 0.0, %v1239
    %v1241 = vpop.f32.mrb[0].mxu0
    %1242 = vdwg.mxu0
    %v1243 = vadd.f32 %v1165, %v1240
    %v1244 = vxor.u32 %v1243, 2147483648
    %v1245 = vmul.f32 %v1244, 1.442695
    %v1246 = vpow.pop %v1245
    %v1247 = vadd.f32 %v1246, 1.0
    %v1248 = vrcp.pop %v1247
    %v1249 = vmul.f32 1.0, %v1248
    %v1250 = vtanh.pop %v1243
    %v1251 = vmul.f32 %v1249, 0.0
    %1253 = vrot.lane.b32.xlu0 %v1250, 64
    %v1254 = vpop.permute.xlu0 %1253
    %v1256 = vmul.f32 %v1249, %v1254
    %1258 = vrot.lane.b32.xlu0 %v1256, 32
    %v1259 = vpop.permute.xlu0 %1258
    %v1261 = vadd.f32 %v1251, %v1259
    %v1262 = vtanh.pop %v1261
    %1264 = vrot.lane.b32.xlu0 %v1262, 64
    %v1265 = vpop.permute.xlu0 %1264
    %v1267 = vmul.f32 %v1249, %v1265
    %1269 = vrot.lane.b32.xlu0 %v1267, 32
    %v1270 = vpop.permute.xlu0 %1269
    %1272 = vst.msk [vmem:[#allocation2] sm:$0x3] %vm302, %v1270
    %v1273 = vsel %vm199, %v1270, 0
    %1275 = vmatprep.subr.mxu0 0.0
    %1276 = vmatpush1.msra.mxu0 %v1081
    %1277 = vmatprep.subr.mxu0 0.0
    %1278 = vmatpush1.msra.mxu0 %v1082
    %1279 = vmatprep.subr.mxu0 0.0
    %1280 = vmatpush1.msra.mxu0 %v1083
    %1281 = vmatprep.subr.mxu0 0.0
    %1282 = vmatpush1.msra.mxu0 %v1084
    %1283 = vmatprep.subr.mxu0 0.0
    %1284 = vmatpush1.msra.mxu0 0.0
    %1285 = vmatprep.subr.mxu0 0.0
    %1286 = vmatpush1.msra.mxu0 0.0
    %1287 = vmatprep.subr.mxu0 0.0
    %1288 = vmatpush1.msra.mxu0 0.0
    %1289 = vmatprep.subr.mxu0 0.0
    %1290 = vmatpush1.msra.mxu0 0.0
    %1291 = vmatprep.subr.mxu0 0.0
    %1292 = vmatpush1.msra.mxu0 0.0
    %1293 = vmatprep.subr.mxu0 0.0
    %1294 = vmatpush1.msra.mxu0 0.0
    %1295 = vmatprep.subr.mxu0 0.0
    %1296 = vmatpush1.msra.mxu0 0.0
    %1297 = vmatprep.subr.mxu0 0.0
    %1298 = vmatpush1.msra.mxu0 0.0
    %1299 = vmatprep.subr.mxu0 0.0
    %1300 = vmatpush1.msra.mxu0 0.0
    %1301 = vmatprep.subr.mxu0 0.0
    %1302 = vmatpush1.msra.mxu0 0.0
    %1303 = vmatprep.subr.mxu0 0.0
    %1304 = vmatpush1.msra.mxu0 0.0
    %1305 = vmatprep.subr.mxu0 0.0
    %1306 = vmatpush1.msra.mxu0 0.0
    %1307 = vmatprep.subr.mxu0 0.0
    %1308 = vmatpush1.msra.mxu0 0.0
    %1309 = vmatprep.subr.mxu0 0.0
    %1310 = vmatpush1.msra.mxu0 0.0
    %1311 = vmatprep.subr.mxu0 0.0
    %1312 = vmatpush1.msra.mxu0 0.0
    %1313 = vmatprep.subr.mxu0 0.0
    %1314 = vmatpush1.msra.mxu0 0.0
    %1315 = vmatprep.subr.mxu0 0.0
    %1316 = vmatpush1.msra.mxu0 0.0
    %1317 = vmatprep.subr.mxu0 0.0
    %1318 = vmatpush1.msra.mxu0 0.0
    %1319 = vmatprep.subr.mxu0 0.0
    %1320 = vmatpush1.msra.mxu0 0.0
    %1321 = vmatprep.subr.mxu0 0.0
    %1322 = vmatpush1.msra.mxu0 0.0
    %1323 = vmatprep.subr.mxu0 0.0
    %1324 = vmatpush1.msra.mxu0 0.0
    %1325 = vmatprep.subr.mxu0 0.0
    %1326 = vmatpush1.msra.mxu0 0.0
    %1327 = vmatprep.subr.mxu0 0.0
    %1328 = vmatpush1.msra.mxu0 0.0
    %1329 = vmatprep.subr.mxu0 0.0
    %1330 = vmatpush1.msra.mxu0 0.0
    %1331 = vmatprep.subr.mxu0 0.0
    %1332 = vmatpush1.msra.mxu0 0.0
    %1333 = vmatprep.subr.mxu0 0.0
    %1334 = vmatpush1.msra.mxu0 0.0
    %1335 = vmatprep.subr.mxu0 0.0
    %1336 = vmatpush1.msra.mxu0 0.0
    %1337 = vmatprep.subr.mxu0 0.0
    %1338 = vmatpush1.msra.mxu0 0.0
    %1339 = vmatprep.mubr.f32.mxu0 0.0
    %1340 = vmatmul.mubr.f32.gmra.mrb[0].mxu0 %v1273
    %v1341 = vpop.f32.mrb[0].mxu0
    %v1342 = vadd.f32 0.0, %v1341
    %v1343 = vpop.f32.mrb[0].mxu0
    %1344 = vdwg.mxu0
    %v1346 = vrot.slane %v1342, 6
    %v1348 = vadd.f32 %v1165, %v1346
    %v1349 = vxor.u32 %v1348, 2147483648
    %v1350 = vmul.f32 %v1349, 1.442695
    %v1351 = vpow.pop %v1350
    %v1352 = vadd.f32 %v1351, 1.0
    %v1353 = vrcp.pop %v1352
    %v1354 = vmul.f32 1.0, %v1353
    %v1355 = vtanh.pop %v1348
    %v1357 = vrot.slane %v1261, 6
    %v1359 = vmul.f32 %v1354, %v1357
    %1361 = vrot.lane.b32.xlu0 %v1355, 64
    %v1362 = vpop.permute.xlu0 %1361
    %v1364 = vmul.f32 %v1354, %v1362
    %1366 = vrot.lane.b32.xlu0 %v1364, 32
    %v1367 = vpop.permute.xlu0 %1366
    %v1369 = vadd.f32 %v1359, %v1367
    %v1370 = vtanh.pop %v1369
    %1372 = vrot.lane.b32.xlu0 %v1370, 64
    %v1373 = vpop.permute.xlu0 %1372
    %v1375 = vmul.f32 %v1354, %v1373
    %1377 = vrot.lane.b32.xlu0 %v1375, 32
    %v1378 = vpop.permute.xlu0 %1377
    %1380 = vst.msk [vmem:[#allocation2] sm:$0xc] %vm411, %v1378
    %v1381 = vrot.slane %v1375, 2
    %1382 = vrot.lane.b32.xlu0 %v1381, 32
    %v1383 = vpop.permute.xlu0 %1382
    %v1384 = vsel %vm199, %v1383, 0
    %1386 = vmatprep.subr.mxu0 0.0
    %1387 = vmatpush1.msra.mxu0 %v1081
    %1388 = vmatprep.subr.mxu0 0.0
    %1389 = vmatpush1.msra.mxu0 %v1082
    %1390 = vmatprep.subr.mxu0 0.0
    %1391 = vmatpush1.msra.mxu0 %v1083
    %1392 = vmatprep.subr.mxu0 0.0
    %1393 = vmatpush1.msra.mxu0 %v1084
    %1394 = vmatprep.subr.mxu0 0.0
    %1395 = vmatpush1.msra.mxu0 0.0
    %1396 = vmatprep.subr.mxu0 0.0
    %1397 = vmatpush1.msra.mxu0 0.0
    %1398 = vmatprep.subr.mxu0 0.0
    %1399 = vmatpush1.msra.mxu0 0.0
    %1400 = vmatprep.subr.mxu0 0.0
    %1401 = vmatpush1.msra.mxu0 0.0
    %1402 = vmatprep.subr.mxu0 0.0
    %1403 = vmatpush1.msra.mxu0 0.0
    %1404 = vmatprep.subr.mxu0 0.0
    %1405 = vmatpush1.msra.mxu0 0.0
    %1406 = vmatprep.subr.mxu0 0.0
    %1407 = vmatpush1.msra.mxu0 0.0
    %1408 = vmatprep.subr.mxu0 0.0
    %1409 = vmatpush1.msra.mxu0 0.0
    %1410 = vmatprep.subr.mxu0 0.0
    %1411 = vmatpush1.msra.mxu0 0.0
    %1412 = vmatprep.subr.mxu0 0.0
    %1413 = vmatpush1.msra.mxu0 0.0
    %1414 = vmatprep.subr.mxu0 0.0
    %1415 = vmatpush1.msra.mxu0 0.0
    %1416 = vmatprep.subr.mxu0 0.0
    %1417 = vmatpush1.msra.mxu0 0.0
    %1418 = vmatprep.subr.mxu0 0.0
    %1419 = vmatpush1.msra.mxu0 0.0
    %1420 = vmatprep.subr.mxu0 0.0
    %1421 = vmatpush1.msra.mxu0 0.0
    %1422 = vmatprep.subr.mxu0 0.0
    %1423 = vmatpush1.msra.mxu0 0.0
    %1424 = vmatprep.subr.mxu0 0.0
    %1425 = vmatpush1.msra.mxu0 0.0
    %1426 = vmatprep.subr.mxu0 0.0
    %1427 = vmatpush1.msra.mxu0 0.0
    %1428 = vmatprep.subr.mxu0 0.0
    %1429 = vmatpush1.msra.mxu0 0.0
    %1430 = vmatprep.subr.mxu0 0.0
    %1431 = vmatpush1.msra.mxu0 0.0
    %1432 = vmatprep.subr.mxu0 0.0
    %1433 = vmatpush1.msra.mxu0 0.0
    %1434 = vmatprep.subr.mxu0 0.0
    %1435 = vmatpush1.msra.mxu0 0.0
    %1436 = vmatprep.subr.mxu0 0.0
    %1437 = vmatpush1.msra.mxu0 0.0
    %1438 = vmatprep.subr.mxu0 0.0
    %1439 = vmatpush1.msra.mxu0 0.0
    %1440 = vmatprep.subr.mxu0 0.0
    %1441 = vmatpush1.msra.mxu0 0.0
    %1442 = vmatprep.subr.mxu0 0.0
    %1443 = vmatpush1.msra.mxu0 0.0
    %1444 = vmatprep.subr.mxu0 0.0
    %1445 = vmatpush1.msra.mxu0 0.0
    %1446 = vmatprep.subr.mxu0 0.0
    %1447 = vmatpush1.msra.mxu0 0.0
    %1448 = vmatprep.subr.mxu0 0.0
    %1449 = vmatpush1.msra.mxu0 0.0
    %1450 = vmatprep.mubr.f32.mxu0 0.0
    %1451 = vmatmul.mubr.f32.gmra.mrb[0].mxu0 %v1384
    %v1452 = vpop.f32.mrb[0].mxu0
    %v1453 = vadd.f32 0.0, %v1452
    %v1454 = vpop.f32.mrb[0].mxu0
    %1455 = vdwg.mxu0
    %v1457 = vrot.slane %v1453, 4
    %v1459 = vadd.f32 %v1165, %v1457
    %v1460 = vxor.u32 %v1459, 2147483648
    %v1461 = vmul.f32 %v1460, 1.442695
    %v1462 = vpow.pop %v1461
    %v1463 = vadd.f32 %v1462, 1.0
    %v1464 = vrcp.pop %v1463
    %v1465 = vmul.f32 1.0, %v1464
    %v1466 = vtanh.pop %v1459
    %v1468 = vrot.slane %v1369, 6
    %v1470 = vmul.f32 %v1465, %v1468
    %1472 = vrot.lane.b32.xlu0 %v1466, 64
    %v1473 = vpop.permute.xlu0 %1472
    %v1475 = vmul.f32 %v1465, %v1473
    %1477 = vrot.lane.b32.xlu0 %v1475, 32
    %v1478 = vpop.permute.xlu0 %1477
    %v1480 = vadd.f32 %v1470, %v1478
    %v1481 = vtanh.pop %v1480
    %1483 = vrot.lane.b32.xlu0 %v1481, 64
    %v1484 = vpop.permute.xlu0 %1483
    %v1486 = vmul.f32 %v1465, %v1484
    %1488 = vrot.lane.b32.xlu0 %v1486, 32
    %v1489 = vpop.permute.xlu0 %1488
    %1491 = vst.msk [vmem:[#allocation2] sm:$0x30] %vm523, %v1489
    %v1492 = vrot.slane %v1486, 4
    %1493 = vrot.lane.b32.xlu0 %v1492, 32
    %v1494 = vpop.permute.xlu0 %1493
    %v1495 = vsel %vm199, %v1494, 0
    %1497 = vmatprep.subr.mxu0 0.0
    %1498 = vmatpush1.msra.mxu0 %v1081
    %1499 = vmatprep.subr.mxu0 0.0
    %1500 = vmatpush1.msra.mxu0 %v1082
    %1501 = vmatprep.subr.mxu0 0.0
    %1502 = vmatpush1.msra.mxu0 %v1083
    %1503 = vmatprep.subr.mxu0 0.0
    %1504 = vmatpush1.msra.mxu0 %v1084
    %1505 = vmatprep.subr.mxu0 0.0
    %1506 = vmatpush1.msra.mxu0 0.0
    %1507 = vmatprep.subr.mxu0 0.0
    %1508 = vmatpush1.msra.mxu0 0.0
    %1509 = vmatprep.subr.mxu0 0.0
    %1510 = vmatpush1.msra.mxu0 0.0
    %1511 = vmatprep.subr.mxu0 0.0
    %1512 = vmatpush1.msra.mxu0 0.0
    %1513 = vmatprep.subr.mxu0 0.0
    %1514 = vmatpush1.msra.mxu0 0.0
    %1515 = vmatprep.subr.mxu0 0.0
    %1516 = vmatpush1.msra.mxu0 0.0
    %1517 = vmatprep.subr.mxu0 0.0
    %1518 = vmatpush1.msra.mxu0 0.0
    %1519 = vmatprep.subr.mxu0 0.0
    %1520 = vmatpush1.msra.mxu0 0.0
    %1521 = vmatprep.subr.mxu0 0.0
    %1522 = vmatpush1.msra.mxu0 0.0
    %1523 = vmatprep.subr.mxu0 0.0
    %1524 = vmatpush1.msra.mxu0 0.0
    %1525 = vmatprep.subr.mxu0 0.0
    %1526 = vmatpush1.msra.mxu0 0.0
    %1527 = vmatprep.subr.mxu0 0.0
    %1528 = vmatpush1.msra.mxu0 0.0
    %1529 = vmatprep.subr.mxu0 0.0
    %1530 = vmatpush1.msra.mxu0 0.0
    %1531 = vmatprep.subr.mxu0 0.0
    %1532 = vmatpush1.msra.mxu0 0.0
    %1533 = vmatprep.subr.mxu0 0.0
    %1534 = vmatpush1.msra.mxu0 0.0
    %1535 = vmatprep.subr.mxu0 0.0
    %1536 = vmatpush1.msra.mxu0 0.0
    %1537 = vmatprep.subr.mxu0 0.0
    %1538 = vmatpush1.msra.mxu0 0.0
    %1539 = vmatprep.subr.mxu0 0.0
    %1540 = vmatpush1.msra.mxu0 0.0
    %1541 = vmatprep.subr.mxu0 0.0
    %1542 = vmatpush1.msra.mxu0 0.0
    %1543 = vmatprep.subr.mxu0 0.0
    %1544 = vmatpush1.msra.mxu0 0.0
    %1545 = vmatprep.subr.mxu0 0.0
    %1546 = vmatpush1.msra.mxu0 0.0
    %1547 = vmatprep.subr.mxu0 0.0
    %1548 = vmatpush1.msra.mxu0 0.0
    %1549 = vmatprep.subr.mxu0 0.0
    %1550 = vmatpush1.msra.mxu0 0.0
    %1551 = vmatprep.subr.mxu0 0.0
    %1552 = vmatpush1.msra.mxu0 0.0
    %1553 = vmatprep.subr.mxu0 0.0
    %1554 = vmatpush1.msra.mxu0 0.0
    %1555 = vmatprep.subr.mxu0 0.0
    %1556 = vmatpush1.msra.mxu0 0.0
    %1557 = vmatprep.subr.mxu0 0.0
    %1558 = vmatpush1.msra.mxu0 0.0
    %1559 = vmatprep.subr.mxu0 0.0
    %1560 = vmatpush1.msra.mxu0 0.0
    %1561 = vmatprep.mubr.f32.mxu0 0.0
    %1562 = vmatmul.mubr.f32.gmra.mrb[0].mxu0 %v1495
    %v1563 = vpop.f32.mrb[0].mxu0
    %v1564 = vadd.f32 0.0, %v1563
    %v1565 = vpop.f32.mrb[0].mxu0
    %1566 = vdwg.mxu0
    %v1568 = vrot.slane %v1564, 2
    %v1570 = vadd.f32 %v1165, %v1568
    %v1571 = vxor.u32 %v1570, 2147483648
    %v1572 = vmul.f32 %v1571, 1.442695
    %v1573 = vpow.pop %v1572
    %v1574 = vadd.f32 %v1573, 1.0
    %v1575 = vrcp.pop %v1574
    %v1576 = vmul.f32 1.0, %v1575
    %v1577 = vtanh.pop %v1570
    %v1579 = vrot.slane %v1480, 6
    %v1581 = vmul.f32 %v1576, %v1579
    %1583 = vrot.lane.b32.xlu0 %v1577, 64
    %v1584 = vpop.permute.xlu0 %1583
    %v1586 = vmul.f32 %v1576, %v1584
    %1588 = vrot.lane.b32.xlu0 %v1586, 32
    %v1589 = vpop.permute.xlu0 %1588
    %v1591 = vadd.f32 %v1581, %v1589
    %v1592 = vtanh.pop %v1591
    %1594 = vrot.lane.b32.xlu0 %v1592, 64
    %v1595 = vpop.permute.xlu0 %1594
    %v1597 = vmul.f32 %v1576, %v1595
    %1599 = vrot.lane.b32.xlu0 %v1597, 32
    %v1600 = vpop.permute.xlu0 %1599
    %1602 = vst.msk [vmem:[#allocation2] sm:$0xc0] %vm635, %v1600
    %v1603 = vrot.slane %v1597, 6
    %1604 = vrot.lane.b32.xlu0 %v1603, 32
    %v1605 = vpop.permute.xlu0 %1604
    %v1606 = vsel %vm199, %v1605, 0
    %1608 = vmatprep.subr.mxu0 0.0
    %1609 = vmatpush1.msra.mxu0 %v1081
    %1610 = vmatprep.subr.mxu0 0.0
    %1611 = vmatpush1.msra.mxu0 %v1082
    %1612 = vmatprep.subr.mxu0 0.0
    %1613 = vmatpush1.msra.mxu0 %v1083
    %1614 = vmatprep.subr.mxu0 0.0
    %1615 = vmatpush1.msra.mxu0 %v1084
    %1616 = vmatprep.subr.mxu0 0.0
    %1617 = vmatpush1.msra.mxu0 0.0
    %1618 = vmatprep.subr.mxu0 0.0
    %1619 = vmatpush1.msra.mxu0 0.0
    %1620 = vmatprep.subr.mxu0 0.0
    %1621 = vmatpush1.msra.mxu0 0.0
    %1622 = vmatprep.subr.mxu0 0.0
    %1623 = vmatpush1.msra.mxu0 0.0
    %1624 = vmatprep.subr.mxu0 0.0
    %1625 = vmatpush1.msra.mxu0 0.0
    %1626 = vmatprep.subr.mxu0 0.0
    %1627 = vmatpush1.msra.mxu0 0.0
    %1628 = vmatprep.subr.mxu0 0.0
    %1629 = vmatpush1.msra.mxu0 0.0
    %1630 = vmatprep.subr.mxu0 0.0
    %1631 = vmatpush1.msra.mxu0 0.0
    %1632 = vmatprep.subr.mxu0 0.0
    %1633 = vmatpush1.msra.mxu0 0.0
    %1634 = vmatprep.subr.mxu0 0.0
    %1635 = vmatpush1.msra.mxu0 0.0
    %1636 = vmatprep.subr.mxu0 0.0
    %1637 = vmatpush1.msra.mxu0 0.0
    %1638 = vmatprep.subr.mxu0 0.0
    %1639 = vmatpush1.msra.mxu0 0.0
    %1640 = vmatprep.subr.mxu0 0.0
    %1641 = vmatpush1.msra.mxu0 0.0
    %1642 = vmatprep.subr.mxu0 0.0
    %1643 = vmatpush1.msra.mxu0 0.0
    %1644 = vmatprep.subr.mxu0 0.0
    %1645 = vmatpush1.msra.mxu0 0.0
    %1646 = vmatprep.subr.mxu0 0.0
    %1647 = vmatpush1.msra.mxu0 0.0
    %1648 = vmatprep.subr.mxu0 0.0
    %1649 = vmatpush1.msra.mxu0 0.0
    %1650 = vmatprep.subr.mxu0 0.0
    %1651 = vmatpush1.msra.mxu0 0.0
    %1652 = vmatprep.subr.mxu0 0.0
    %1653 = vmatpush1.msra.mxu0 0.0
    %1654 = vmatprep.subr.mxu0 0.0
    %1655 = vmatpush1.msra.mxu0 0.0
    %1656 = vmatprep.subr.mxu0 0.0
    %1657 = vmatpush1.msra.mxu0 0.0
    %1658 = vmatprep.subr.mxu0 0.0
    %1659 = vmatpush1.msra.mxu0 0.0
    %1660 = vmatprep.subr.mxu0 0.0
    %1661 = vmatpush1.msra.mxu0 0.0
    %1662 = vmatprep.subr.mxu0 0.0
    %1663 = vmatpush1.msra.mxu0 0.0
    %1664 = vmatprep.subr.mxu0 0.0
    %1665 = vmatpush1.msra.mxu0 0.0
    %1666 = vmatprep.subr.mxu0 0.0
    %1667 = vmatpush1.msra.mxu0 0.0
    %1668 = vmatprep.subr.mxu0 0.0
    %1669 = vmatpush1.msra.mxu0 0.0
    %1670 = vmatprep.subr.mxu0 0.0
    %1671 = vmatpush1.msra.mxu0 0.0
    %1672 = vmatprep.mubr.f32.mxu0 0.0
    %1673 = vmatmul.mubr.f32.gmra.mrb[0].mxu0 %v1606
    %v1674 = vpop.f32.mrb[0].mxu0
    %v1675 = vadd.f32 0.0, %v1674
    %v1676 = vpop.f32.mrb[0].mxu0
    %1677 = vdwg.mxu0
    %v1678 = vadd.f32 %v1170, %v1675
    %v1679 = vxor.u32 %v1678, 2147483648
    %v1680 = vmul.f32 %v1679, 1.442695
    %v1681 = vpow.pop %v1680
    %v1682 = vadd.f32 %v1681, 1.0
    %v1683 = vrcp.pop %v1682
    %v1684 = vmul.f32 1.0, %v1683
    %v1685 = vtanh.pop %v1678
    %v1687 = vrot.slane %v1591, 6
    %v1689 = vmul.f32 %v1684, %v1687
    %1691 = vrot.lane.b32.xlu0 %v1685, 64
    %v1692 = vpop.permute.xlu0 %1691
    %v1694 = vmul.f32 %v1684, %v1692
    %1696 = vrot.lane.b32.xlu0 %v1694, 32
    %v1697 = vpop.permute.xlu0 %1696
    %v1699 = vadd.f32 %v1689, %v1697
    %v1700 = vtanh.pop %v1699
    %1702 = vrot.lane.b32.xlu0 %v1700, 64
    %v1703 = vpop.permute.xlu0 %1702
    %v1705 = vmul.f32 %v1684, %v1703
    %1707 = vrot.lane.b32.xlu0 %v1705, 32
    %v1708 = vpop.permute.xlu0 %1707
    %1710 = vst.msk [vmem:[#allocation2 + $0x8] sm:$0x3] %vm302, %v1708
    %v1711 = vsel %vm199, %v1708, 0
    %1713 = vmatprep.subr.mxu0 0.0
    %1714 = vmatpush1.msra.mxu0 %v1081
    %1715 = vmatprep.subr.mxu0 0.0
    %1716 = vmatpush1.msra.mxu0 %v1082
    %1717 = vmatprep.subr.mxu0 0.0
    %1718 = vmatpush1.msra.mxu0 %v1083
    %1719 = vmatprep.subr.mxu0 0.0
    %1720 = vmatpush1.msra.mxu0 %v1084
    %1721 = vmatprep.subr.mxu0 0.0
    %1722 = vmatpush1.msra.mxu0 0.0
    %1723 = vmatprep.subr.mxu0 0.0
    %1724 = vmatpush1.msra.mxu0 0.0
    %1725 = vmatprep.subr.mxu0 0.0
    %1726 = vmatpush1.msra.mxu0 0.0
    %1727 = vmatprep.subr.mxu0 0.0
    %1728 = vmatpush1.msra.mxu0 0.0
    %1729 = vmatprep.subr.mxu0 0.0
    %1730 = vmatpush1.msra.mxu0 0.0
    %1731 = vmatprep.subr.mxu0 0.0
    %1732 = vmatpush1.msra.mxu0 0.0
    %1733 = vmatprep.subr.mxu0 0.0
    %1734 = vmatpush1.msra.mxu0 0.0
    %1735 = vmatprep.subr.mxu0 0.0
    %1736 = vmatpush1.msra.mxu0 0.0
    %1737 = vmatprep.subr.mxu0 0.0
    %1738 = vmatpush1.msra.mxu0 0.0
    %1739 = vmatprep.subr.mxu0 0.0
    %1740 = vmatpush1.msra.mxu0 0.0
    %1741 = vmatprep.subr.mxu0 0.0
    %1742 = vmatpush1.msra.mxu0 0.0
    %1743 = vmatprep.subr.mxu0 0.0
    %1744 = vmatpush1.msra.mxu0 0.0
    %1745 = vmatprep.subr.mxu0 0.0
    %1746 = vmatpush1.msra.mxu0 0.0
    %1747 = vmatprep.subr.mxu0 0.0
    %1748 = vmatpush1.msra.mxu0 0.0
    %1749 = vmatprep.subr.mxu0 0.0
    %1750 = vmatpush1.msra.mxu0 0.0
    %1751 = vmatprep.subr.mxu0 0.0
    %1752 = vmatpush1.msra.mxu0 0.0
    %1753 = vmatprep.subr.mxu0 0.0
    %1754 = vmatpush1.msra.mxu0 0.0
    %1755 = vmatprep.subr.mxu0 0.0
    %1756 = vmatpush1.msra.mxu0 0.0
    %1757 = vmatprep.subr.mxu0 0.0
    %1758 = vmatpush1.msra.mxu0 0.0
    %1759 = vmatprep.subr.mxu0 0.0
    %1760 = vmatpush1.msra.mxu0 0.0
    %1761 = vmatprep.subr.mxu0 0.0
    %1762 = vmatpush1.msra.mxu0 0.0
    %1763 = vmatprep.subr.mxu0 0.0
    %1764 = vmatpush1.msra.mxu0 0.0
    %1765 = vmatprep.subr.mxu0 0.0
    %1766 = vmatpush1.msra.mxu0 0.0
    %1767 = vmatprep.subr.mxu0 0.0
    %1768 = vmatpush1.msra.mxu0 0.0
    %1769 = vmatprep.subr.mxu0 0.0
    %1770 = vmatpush1.msra.mxu0 0.0
    %1771 = vmatprep.subr.mxu0 0.0
    %1772 = vmatpush1.msra.mxu0 0.0
    %1773 = vmatprep.subr.mxu0 0.0
    %1774 = vmatpush1.msra.mxu0 0.0
    %1775 = vmatprep.subr.mxu0 0.0
    %1776 = vmatpush1.msra.mxu0 0.0
    %1777 = vmatprep.mubr.f32.mxu0 0.0
    %1778 = vmatmul.mubr.f32.gmra.mrb[0].mxu0 %v1711
    %v1779 = vpop.f32.mrb[0].mxu0
    %v1780 = vadd.f32 0.0, %v1779
    %v1781 = vpop.f32.mrb[0].mxu0
    %1782 = vdwg.mxu0
    %v1784 = vrot.slane %v1780, 6
    %v1786 = vadd.f32 %v1170, %v1784
    %v1787 = vxor.u32 %v1786, 2147483648
    %v1788 = vmul.f32 %v1787, 1.442695
    %v1789 = vpow.pop %v1788
    %v1790 = vadd.f32 %v1789, 1.0
    %v1791 = vrcp.pop %v1790
    %v1792 = vmul.f32 1.0, %v1791
    %v1793 = vtanh.pop %v1786
    %v1795 = vrot.slane %v1699, 6
    %v1797 = vmul.f32 %v1792, %v1795
    %1799 = vrot.lane.b32.xlu0 %v1793, 64
    %v1800 = vpop.permute.xlu0 %1799
    %v1802 = vmul.f32 %v1792, %v1800
    %1804 = vrot.lane.b32.xlu0 %v1802, 32
    %v1805 = vpop.permute.xlu0 %1804
    %v1807 = vadd.f32 %v1797, %v1805
    %v1808 = vtanh.pop %v1807
    %1810 = vrot.lane.b32.xlu0 %v1808, 64
    %v1811 = vpop.permute.xlu0 %1810
    %v1813 = vmul.f32 %v1792, %v1811
    %1815 = vrot.lane.b32.xlu0 %v1813, 32
    %v1816 = vpop.permute.xlu0 %1815
    %1818 = vst.msk [vmem:[#allocation2 + $0x8] sm:$0xc] %vm411, %v1816
    %v1819 = vrot.slane %v1813, 2
    %1820 = vrot.lane.b32.xlu0 %v1819, 32
    %v1821 = vpop.permute.xlu0 %1820
    %v1822 = vsel %vm199, %v1821, 0
    %1824 = vmatprep.subr.mxu0 0.0
    %1825 = vmatpush1.msra.mxu0 %v1081
    %1826 = vmatprep.subr.mxu0 0.0
    %1827 = vmatpush1.msra.mxu0 %v1082
    %1828 = vmatprep.subr.mxu0 0.0
    %1829 = vmatpush1.msra.mxu0 %v1083
    %1830 = vmatprep.subr.mxu0 0.0
    %1831 = vmatpush1.msra.mxu0 %v1084
    %1832 = vmatprep.subr.mxu0 0.0
    %1833 = vmatpush1.msra.mxu0 0.0
    %1834 = vmatprep.subr.mxu0 0.0
    %1835 = vmatpush1.msra.mxu0 0.0
    %1836 = vmatprep.subr.mxu0 0.0
    %1837 = vmatpush1.msra.mxu0 0.0
    %1838 = vmatprep.subr.mxu0 0.0
    %1839 = vmatpush1.msra.mxu0 0.0
    %1840 = vmatprep.subr.mxu0 0.0
    %1841 = vmatpush1.msra.mxu0 0.0
    %1842 = vmatprep.subr.mxu0 0.0
    %1843 = vmatpush1.msra.mxu0 0.0
    %1844 = vmatprep.subr.mxu0 0.0
    %1845 = vmatpush1.msra.mxu0 0.0
    %1846 = vmatprep.subr.mxu0 0.0
    %1847 = vmatpush1.msra.mxu0 0.0
    %1848 = vmatprep.subr.mxu0 0.0
    %1849 = vmatpush1.msra.mxu0 0.0
    %1850 = vmatprep.subr.mxu0 0.0
    %1851 = vmatpush1.msra.mxu0 0.0
    %1852 = vmatprep.subr.mxu0 0.0
    %1853 = vmatpush1.msra.mxu0 0.0
    %1854 = vmatprep.subr.mxu0 0.0
    %1855 = vmatpush1.msra.mxu0 0.0
    %1856 = vmatprep.subr.mxu0 0.0
    %1857 = vmatpush1.msra.mxu0 0.0
    %1858 = vmatprep.subr.mxu0 0.0
    %1859 = vmatpush1.msra.mxu0 0.0
    %1860 = vmatprep.subr.mxu0 0.0
    %1861 = vmatpush1.msra.mxu0 0.0
    %1862 = vmatprep.subr.mxu0 0.0
    %1863 = vmatpush1.msra.mxu0 0.0
    %1864 = vmatprep.subr.mxu0 0.0
    %1865 = vmatpush1.msra.mxu0 0.0
    %1866 = vmatprep.subr.mxu0 0.0
    %1867 = vmatpush1.msra.mxu0 0.0
    %1868 = vmatprep.subr.mxu0 0.0
    %1869 = vmatpush1.msra.mxu0 0.0
    %1870 = vmatprep.subr.mxu0 0.0
    %1871 = vmatpush1.msra.mxu0 0.0
    %1872 = vmatprep.subr.mxu0 0.0
    %1873 = vmatpush1.msra.mxu0 0.0
    %1874 = vmatprep.subr.mxu0 0.0
    %1875 = vmatpush1.msra.mxu0 0.0
    %1876 = vmatprep.subr.mxu0 0.0
    %1877 = vmatpush1.msra.mxu0 0.0
    %1878 = vmatprep.subr.mxu0 0.0
    %1879 = vmatpush1.msra.mxu0 0.0
    %1880 = vmatprep.subr.mxu0 0.0
    %1881 = vmatpush1.msra.mxu0 0.0
    %1882 = vmatprep.subr.mxu0 0.0
    %1883 = vmatpush1.msra.mxu0 0.0
    %1884 = vmatprep.subr.mxu0 0.0
    %1885 = vmatpush1.msra.mxu0 0.0
    %1886 = vmatprep.subr.mxu0 0.0
    %1887 = vmatpush1.msra.mxu0 0.0
    %1888 = vmatprep.mubr.f32.mxu0 0.0
    %1889 = vmatmul.mubr.f32.gmra.mrb[0].mxu0 %v1822
    %v1890 = vpop.f32.mrb[0].mxu0
    %v1891 = vadd.f32 0.0, %v1890
    %v1892 = vpop.f32.mrb[0].mxu0
    %1893 = vdwg.mxu0
    %v1895 = vrot.slane %v1891, 4
    %v1897 = vadd.f32 %v1170, %v1895
    %v1898 = vxor.u32 %v1897, 2147483648
    %v1899 = vmul.f32 %v1898, 1.442695
    %v1900 = vpow.pop %v1899
    %v1901 = vadd.f32 %v1900, 1.0
    %v1902 = vrcp.pop %v1901
    %v1903 = vmul.f32 1.0, %v1902
    %v1904 = vtanh.pop %v1897
    %v1906 = vrot.slane %v1807, 6
    %v1908 = vmul.f32 %v1903, %v1906
    %1910 = vrot.lane.b32.xlu0 %v1904, 64
    %v1911 = vpop.permute.xlu0 %1910
    %v1913 = vmul.f32 %v1903, %v1911
    %1915 = vrot.lane.b32.xlu0 %v1913, 32
    %v1916 = vpop.permute.xlu0 %1915
    %v1918 = vadd.f32 %v1908, %v1916
    %v1919 = vtanh.pop %v1918
    %1921 = vrot.lane.b32.xlu0 %v1919, 64
    %v1922 = vpop.permute.xlu0 %1921
    %v1924 = vmul.f32 %v1903, %v1922
    %1926 = vrot.lane.b32.xlu0 %v1924, 32
    %v1927 = vpop.permute.xlu0 %1926
    %1929 = vst.msk [vmem:[#allocation2 + $0x8] sm:$0x30] %vm523, %v1927
    %v1930 = vrot.slane %v1924, 4
    %1931 = vrot.lane.b32.xlu0 %v1930, 32
    %v1932 = vpop.permute.xlu0 %1931
    %v1933 = vsel %vm199, %v1932, 0
    %1935 = vmatprep.subr.mxu0 0.0
    %1936 = vmatpush1.msra.mxu0 %v1081
    %1937 = vmatprep.subr.mxu0 0.0
    %1938 = vmatpush1.msra.mxu0 %v1082
    %1939 = vmatprep.subr.mxu0 0.0
    %1940 = vmatpush1.msra.mxu0 %v1083
    %1941 = vmatprep.subr.mxu0 0.0
    %1942 = vmatpush1.msra.mxu0 %v1084
    %1943 = vmatprep.subr.mxu0 0.0
    %1944 = vmatpush1.msra.mxu0 0.0
    %1945 = vmatprep.subr.mxu0 0.0
    %1946 = vmatpush1.msra.mxu0 0.0
    %1947 = vmatprep.subr.mxu0 0.0
    %1948 = vmatpush1.msra.mxu0 0.0
    %1949 = vmatprep.subr.mxu0 0.0
    %1950 = vmatpush1.msra.mxu0 0.0
    %1951 = vmatprep.subr.mxu0 0.0
    %1952 = vmatpush1.msra.mxu0 0.0
    %1953 = vmatprep.subr.mxu0 0.0
    %1954 = vmatpush1.msra.mxu0 0.0
    %1955 = vmatprep.subr.mxu0 0.0
    %1956 = vmatpush1.msra.mxu0 0.0
    %1957 = vmatprep.subr.mxu0 0.0
    %1958 = vmatpush1.msra.mxu0 0.0
    %1959 = vmatprep.subr.mxu0 0.0
    %1960 = vmatpush1.msra.mxu0 0.0
    %1961 = vmatprep.subr.mxu0 0.0
    %1962 = vmatpush1.msra.mxu0 0.0
    %1963 = vmatprep.subr.mxu0 0.0
    %1964 = vmatpush1.msra.mxu0 0.0
    %1965 = vmatprep.subr.mxu0 0.0
    %1966 = vmatpush1.msra.mxu0 0.0
    %1967 = vmatprep.subr.mxu0 0.0
    %1968 = vmatpush1.msra.mxu0 0.0
    %1969 = vmatprep.subr.mxu0 0.0
    %1970 = vmatpush1.msra.mxu0 0.0
    %1971 = vmatprep.subr.mxu0 0.0
    %1972 = vmatpush1.msra.mxu0 0.0
    %1973 = vmatprep.subr.mxu0 0.0
    %1974 = vmatpush1.msra.mxu0 0.0
    %1975 = vmatprep.subr.mxu0 0.0
    %1976 = vmatpush1.msra.mxu0 0.0
    %1977 = vmatprep.subr.mxu0 0.0
    %1978 = vmatpush1.msra.mxu0 0.0
    %1979 = vmatprep.subr.mxu0 0.0
    %1980 = vmatpush1.msra.mxu0 0.0
    %1981 = vmatprep.subr.mxu0 0.0
    %1982 = vmatpush1.msra.mxu0 0.0
    %1983 = vmatprep.subr.mxu0 0.0
    %1984 = vmatpush1.msra.mxu0 0.0
    %1985 = vmatprep.subr.mxu0 0.0
    %1986 = vmatpush1.msra.mxu0 0.0
    %1987 = vmatprep.subr.mxu0 0.0
    %1988 = vmatpush1.msra.mxu0 0.0
    %1989 = vmatprep.subr.mxu0 0.0
    %1990 = vmatpush1.msra.mxu0 0.0
    %1991 = vmatprep.subr.mxu0 0.0
    %1992 = vmatpush1.msra.mxu0 0.0
    %1993 = vmatprep.subr.mxu0 0.0
    %1994 = vmatpush1.msra.mxu0 0.0
    %1995 = vmatprep.subr.mxu0 0.0
    %1996 = vmatpush1.msra.mxu0 0.0
    %1997 = vmatprep.subr.mxu0 0.0
    %1998 = vmatpush1.msra.mxu0 0.0
    %1999 = vmatprep.mubr.f32.mxu0 0.0
    %2000 = vmatmul.mubr.f32.gmra.mrb[0].mxu0 %v1933
    %v2001 = vpop.f32.mrb[0].mxu0
    %v2002 = vadd.f32 0.0, %v2001
    %v2003 = vpop.f32.mrb[0].mxu0
    %2004 = vdwg.mxu0
    %v2006 = vrot.slane %v2002, 2
    %v2008 = vadd.f32 %v1170, %v2006
    %v2009 = vxor.u32 %v2008, 2147483648
    %v2010 = vmul.f32 %v2009, 1.442695
    %v2011 = vpow.pop %v2010
    %v2012 = vadd.f32 %v2011, 1.0
    %v2013 = vrcp.pop %v2012
    %v2014 = vmul.f32 1.0, %v2013
    %v2015 = vtanh.pop %v2008
    %v2017 = vrot.slane %v1918, 6
    %v2019 = vmul.f32 %v2014, %v2017
    %2021 = vrot.lane.b32.xlu0 %v2015, 64
    %v2022 = vpop.permute.xlu0 %2021
    %v2024 = vmul.f32 %v2014, %v2022
    %2026 = vrot.lane.b32.xlu0 %v2024, 32
    %v2027 = vpop.permute.xlu0 %2026
    %v2029 = vadd.f32 %v2019, %v2027
    %v2030 = vtanh.pop %v2029
    %2032 = vrot.lane.b32.xlu0 %v2030, 64
    %v2033 = vpop.permute.xlu0 %2032
    %v2035 = vmul.f32 %v2014, %v2033
    %2037 = vrot.lane.b32.xlu0 %v2035, 32
    %v2038 = vpop.permute.xlu0 %2037
    %2040 = vst.msk [vmem:[#allocation2 + $0x8] sm:$0xc0] %vm635, %v2038
    %v2041 = vld [vmem:[#allocation2] sm:$0xff]
    %v2042 = vld [vmem:[#allocation2 + $0x8] sm:$0xff]
    %v2043 = vld [vmem:[%s7] sm:$0x1]
    %v2045 = vlaneseq
    %v2046 = vshrl.u32 %v2045, 7
    %v2047 = vsub.s32 0, %v2046
    %v2048 = vrot.slane %v2043, %v2047
    %v2050 = vmul.f32 %v2041, %v2048
    %v2051 = vmul.f32 %v2042, %v2048
    %v2052 = vsel %vm199, %v2050, 0.0
    %2053 = vadd.xlane.f32.xlu0 %v2052
    %v2054 = vpop.xlane.xlu0 %2053
    %v2055 = vsel %vm199, %v2051, 0.0
    %2056 = vadd.xlane.f32.xlu0 %v2055
    %v2057 = vpop.xlane.xlu0 %2056
    %v2058 = vld [vmem:[#allocation3] sm:$0x1]
    %v2060 = vlaneseq
    %v2061 = vshrl.u32 %v2060, 7
    %v2062 = vsub.s32 0, %v2061
    %v2063 = vrot.slane %v2058, %v2062
    %v2065 = vadd.f32 %v2054, %v2063
    %v2066 = vadd.f32 %v2057, %v2063
    %vm2067 = vcmask 7168
    %2068 = vst.msk [vmem:[%s9] sm:$0xff] %vm2067, %v2065
    %2069 = vst.msk [vmem:[%s9 + $0x8] sm:$0xff] %vm2067, %v2066
    // Predicated region
    $region58: #{tpu_custom_call.1} parent=1 // pred_check
      _
    $region59: #{tpu_custom_call.1} parent=1 // pred_check_branch
      %2071 = sbr.rel (0) target = $region61
    $region60: #{tpu_custom_call.1} parent=1 // pred_region
      _
    $region61: #{tpu_custom_call.1} parent=1 // pred_fallthru
      _
    // Predicated region
    $region62: #{tpu_custom_call.1} parent=1 // pred_check
      _
    $region63: #{tpu_custom_call.1} parent=1 // pred_check_branch
      %2073 = sbr.rel (0) target = $region65
    $region64: #{tpu_custom_call.1} parent=1 // pred_region
      _
    $region65: #{tpu_custom_call.1} parent=1 // pred_fallthru
      _
    %2074 = vsyncpa [#allocation5], 1
    %2075 = vsyncpa [#allocation7], 1
    %2076 = vsyncpa [#allocation10], 1

</llo_original>
